<compile_context>
chip_gen: v5e
topology: v5e:2x2
jax: 0.10.0
libtpu: 0.0.40
codegen_flags: <defaults>
</compile_context>

<pallas_src>
import functools
import math

import jax
import jax.numpy as jnp
import numpy as np
from jax.experimental import pallas as pl
from jax.experimental.pallas import tpu as pltpu

# ---------------- problem sizes (small, consistent with the module) -------------
B = 2          # batch
TQ = 8         # decoder sequence length
TK = 12        # encoder sequence length
D_MODEL = 32
NUM_HEADS = 4
D_HEAD = D_MODEL // NUM_HEADS
NUM_FFN = 64


# ------------------------------- Pallas kernel ----------------------------------
def decoder_block_kernel(lens_ref, dec_ref, enc_ref, w_in_ref, w_out_ref,
                         bln_ref, mask_ref, out_ref, *, num_heads, approx_recip):
    """One invocation processes the whole (batch-folded) block.

    lens_ref : (B*TQ, 1) f32   per-query-row encoder valid length
    dec_ref  : (B*TQ, D) f32   decoder input, batch folded into sublanes
    enc_ref  : (B*TK, D) f32   encoder output, batch folded into sublanes
    w_in_ref : (3, D, 3D) cdt  [Wq|Wk|Wv]_self, [Wq|Wk|Wv]_cross, [W1|pad]
    w_out_ref: (2D+F, D) f32   [Wo_self ; Wo_cross ; W2] stacked on rows
    bln_ref  : (6, 3D)  f32    packed biases + LayerNorm gamma/beta
    mask_ref : (B*TQ, B*TQ+B*TK) f32  [causal additive bias | relative key idx]
    """
    f32 = jnp.float32
    cdt = w_in_ref.dtype                       # stage-1 matmul operand dtype
    btq, d = dec_ref.shape
    btk = enc_ref.shape[0]
    nf = w_out_ref.shape[0] - 2 * d            # FFN hidden width
    nh = num_heads
    dh = d // nh
    inv_sqrt_dh = 1.0 / math.sqrt(dh)

    x = dec_ref[...]                           # (B*TQ, D) f32
    enc = enc_ref[...]                         # (B*TK, D) f32

    # ---- additive masks (static causal bias; 1 compare for the cross mask) -----
    self_bias = mask_ref[:, 0:btq]                              # (BTQ, BTQ)
    rel_key = mask_ref[:, btq:btq + btk]                        # (BTQ, BTK)
    cross_bias = jnp.where(rel_key < lens_ref[...],
                           jnp.float32(0.0), jnp.float32(-1e6))

    def layernorm(v, i):
        g = bln_ref[4:5, d * i:d * (i + 1)]
        b = bln_ref[5:6, d * i:d * (i + 1)]
        mu = jnp.mean(v, axis=-1, keepdims=True)
        var = jnp.mean((v - mu) ** 2, axis=-1, keepdims=True)
        return (v - mu) * jax.lax.rsqrt(var + 1e-5) * g + b

    def dot_nt(a, b):                          # a @ b.T (contract last dims)
        return jax.lax.dot_general(a, b, (((1,), (1,)), ((), ())),
                                   preferred_element_type=f32)

    def attention(q, k, v, bias, wo, bo):
        # q (Sq, D) pre-scaled by 1/sqrt(dh); k, v (Sk, D).  Heads live in
        # dh-wide lane slices.  The MXU has no batched matmul, so per-head
        # score / attn@V pushes are irreducible; scores are stacked on
        # sublanes so the masked softmax runs once over every head.
        sq = q.shape[0]
        s = jnp.concatenate(
            [dot_nt(q[:, h * dh:(h + 1) * dh], k[:, h * dh:(h + 1) * dh]) + bias
             for h in range(nh)], axis=0)                       # (H*Sq, Sk) f32
        m = jnp.max(s, axis=-1, keepdims=True)
        e = jnp.exp(s - m)
        denom = jnp.sum(e, axis=-1, keepdims=True)
        if approx_recip:
            p = e * pl.reciprocal(denom, approx=True)           # EUP slot (bf16 path)
        else:
            p = e / denom                                       # exact (f32 path)
        # per-head attn @ V, heads merged back onto lanes -> (Sq, D)
        o = jnp.concatenate(
            [jnp.dot(p[h * sq:(h + 1) * sq, :], v[:, h * dh:(h + 1) * dh],
                     preferred_element_type=f32)
             for h in range(nh)], axis=1)
        # single merged-head output projection (f32 x f32)
        return jnp.dot(o, wo, preferred_element_type=f32) + bo

    # ---- causal self-attention + add & norm (fused QKV projection) -------------
    qkv_s = (jnp.dot(x.astype(cdt), w_in_ref[0], preferred_element_type=f32)
             + bln_ref[0:1, :])                                 # (BTQ, 3D)
    sa = attention(qkv_s[:, 0:d] * inv_sqrt_dh,
                   qkv_s[:, d:2 * d], qkv_s[:, 2 * d:3 * d],
                   self_bias, w_out_ref[0:d, :], bln_ref[2:3, 0:d])
    queries = layernorm(x + sa, 0)

    # ---- encoder-decoder attention + add & norm (fused KV projection) ----------
    q_c = (jnp.dot(queries.astype(cdt), w_in_ref[1, :, 0:d],
                   preferred_element_type=f32)
           + bln_ref[1:2, 0:d]) * inv_sqrt_dh                   # (BTQ, D)
    kv_c = (jnp.dot(enc.astype(cdt), w_in_ref[1, :, d:3 * d],
                    preferred_element_type=f32)
            + bln_ref[1:2, d:3 * d])                            # (BTK, 2D)
    ca = attention(q_c, kv_c[:, 0:d], kv_c[:, d:2 * d],
                   cross_bias, w_out_ref[d:2 * d, :], bln_ref[2:3, d:2 * d])
    ffn_in = layernorm(queries + ca, 1)

    # ---- position-wise FFN + add & norm ----------------------------------------
    h1 = (jnp.dot(ffn_in.astype(cdt), w_in_ref[2, :, 0:nf],
                  preferred_element_type=f32) + bln_ref[3:4, 0:nf])
    h1 = jnp.maximum(h1, 0.0)
    ffn_out = (jnp.dot(h1, w_out_ref[2 * d:2 * d + nf, :],
                       preferred_element_type=f32) + bln_ref[2:3, 2 * d:3 * d])
    out_ref[...] = layernorm(ffn_in + ffn_out, 2)


# ------------------------------- packing (one-time) ------------------------------
def pack_params(params, compute_dtype=jnp.float32):
    """Repack module parameters into 3 VMEM blobs + 1 static mask blob.

    Called ONCE outside the per-call hot path (review: hoist the repack).
    """
    (w_self, b_self, w_cross, b_cross, ln_g, ln_b, w1, b1, w2, b2) = params
    d = w_self.shape[-1]
    nf = w1.shape[-1]

    # stage-1 weights (fed by cast activations) -> compute_dtype
    w_in = jnp.stack([
        jnp.concatenate([w_self[0], w_self[1], w_self[2]], axis=1),   # Wqkv self
        jnp.concatenate([w_cross[0], w_cross[1], w_cross[2]], axis=1),# Wqkv cross
        jnp.concatenate([w1, jnp.zeros((d, 3 * d - nf), w1.dtype)], axis=1),
    ]).astype(compute_dtype)                                          # (3, D, 3D)

    # stage-2 weights (multiply f32 attention/FFN intermediates) -> stay f32
    w_out = jnp.concatenate([w_self[3], w_cross[3], w2],
                            axis=0).astype(jnp.float32)               # (2D+F, D)

    bln = jnp.stack([
        jnp.concatenate([b_self[0], b_self[1], b_self[2]]),           # bqkv self
        jnp.concatenate([b_cross[0], b_cross[1], b_cross[2]]),        # bqkv cross
        jnp.concatenate([b_self[3], b_cross[3], b2[0]]),              # bo_s|bo_c|b2
        jnp.concatenate([b1[0], jnp.zeros((3 * d - nf,), b1.dtype)]), # b1|pad
        ln_g.reshape(-1),                                             # g0|g1|g2
        ln_b.reshape(-1),                                             # b0|b1|b2
    ]).astype(jnp.float32)                                            # (6, 3D)

    # static mask constants (numpy, compile-time), block-diagonal over the
    # folded batch:  [causal additive bias | relative key index (1e9 = other batch)]
    r = np.arange(B * TQ)[:, None]
    cq = np.arange(B * TQ)[None, :]
    self_bias = np.where(((r // TQ) == (cq // TQ)) & ((cq % TQ) <= (r % TQ)),
                         0.0, -1e6).astype(np.float32)
    ck = np.arange(B * TK)[None, :]
    rel_key = np.where((r // TQ) == (ck // TK),
                       (ck % TK).astype(np.float32), 1e9).astype(np.float32)
    mask_const = jnp.asarray(np.concatenate([self_bias, rel_key], axis=1))

    return (w_in, w_out, bln, mask_const)


# ------------------------------- wrapper ----------------------------------------
@jax.jit
def decoder_block(dec_in, enc_out, enc_valid_lens, packed):
    w_in, w_out, bln, mask_const = packed
    b, tq, d = dec_in.shape
    tk = enc_out.shape[1]
    lens_rows = jnp.repeat(enc_valid_lens.astype(jnp.float32),
                           tq).reshape(b * tq, 1)

    kernel = functools.partial(
        decoder_block_kernel,
        num_heads=NUM_HEADS,
        approx_recip=bool(w_in.dtype != jnp.float32),
    )
    vmem = pl.BlockSpec(memory_space=pltpu.MemorySpace.VMEM)
    out_flat = pl.pallas_call(
        kernel,
        out_shape=jax.ShapeDtypeStruct((b * tq, d), jnp.float32),
        in_specs=[vmem] * 7,
        out_specs=vmem,
    )(
        lens_rows,
        dec_in.reshape(b * tq, d).astype(jnp.float32),
        enc_out.reshape(b * tk, d).astype(jnp.float32),
        w_in, w_out, bln, mask_const,
    )
    return out_flat.reshape(b, tq, d)


# ---------------------------- pure-JAX reference ---------------------------------
def reference_block(dec_in, enc_out, enc_valid_lens, params):
    (w_self, b_self, w_cross, b_cross, ln_g, ln_b, w1, b1, w2, b2) = params

    def layernorm(v, idx):
        mu = jnp.mean(v, axis=-1, keepdims=True)
        var = jnp.mean((v - mu) ** 2, axis=-1, keepdims=True)
        return (v - mu) / jnp.sqrt(var + 1e-5) * ln_g[idx] + ln_b[idx]

    def mha(q_in, kv_in, w, bias, mask):          # q_in: (B,Tq,D) kv_in: (B,Tk,D)
        q = q_in @ w[0] + bias[0]
        k = kv_in @ w[1] + bias[1]
        v = kv_in @ w[2] + bias[2]
        Bq, Tq, _ = q.shape
        Tk = k.shape[1]
        qh = q.reshape(Bq, Tq, NUM_HEADS, D_HEAD)
        kh = k.reshape(Bq, Tk, NUM_HEADS, D_HEAD)
        vh = v.reshape(Bq, Tk, NUM_HEADS, D_HEAD)
        scores = jnp.einsum("bqhd,bkhd->bhqk", qh, kh) / math.sqrt(D_HEAD)
        scores = jnp.where(mask[:, None, :, :], scores, -1e6)
        attn = jax.nn.softmax(scores, axis=-1)
        o = jnp.einsum("bhqk,bkhd->bqhd", attn, vh).reshape(Bq, Tq, -1)
        return o @ w[3] + bias[3]

    Bq, Tq, _ = dec_in.shape
    Tk = enc_out.shape[1]
    causal = (jnp.arange(Tq)[None, :, None] >= jnp.arange(Tq)[None, None, :])
    causal = jnp.broadcast_to(causal, (Bq, Tq, Tq))
    sa = mha(dec_in, dec_in, w_self, b_self, causal)
    queries = layernorm(dec_in + sa, 0)
    cross_mask = jnp.arange(Tk)[None, None, :] < enc_valid_lens[:, None, None]
    cross_mask = jnp.broadcast_to(cross_mask, (Bq, Tq, Tk))
    ca = mha(queries, enc_out, w_cross, b_cross, cross_mask)
    ffn_in = layernorm(queries + ca, 1)
    ffn_out = jnp.maximum(ffn_in @ w1 + b1[0], 0.0) @ w2 + b2[0]
    return layernorm(ffn_in + ffn_out, 2)


# ------------------------------------ main ---------------------------------------
if __name__ == "__main__":
    key = jax.random.PRNGKey(0)
    ks = jax.random.split(key, 12)

    dec_in = jax.random.normal(ks[0], (B, TQ, D_MODEL), jnp.float32)
    enc_out = jax.random.normal(ks[1], (B, TK, D_MODEL), jnp.float32)
    enc_valid_lens = jnp.array([5, TK], dtype=jnp.int32)

    scale = 0.1
    w_self = scale * jax.random.normal(ks[2], (4, D_MODEL, D_MODEL), jnp.float32)
    b_self = scale * jax.random.normal(ks[3], (4, D_MODEL), jnp.float32)
    w_cross = scale * jax.random.normal(ks[4], (4, D_MODEL, D_MODEL), jnp.float32)
    b_cross = scale * jax.random.normal(ks[5], (4, D_MODEL), jnp.float32)
    ln_g = jnp.ones((3, D_MODEL), jnp.float32) + 0.05 * jax.random.normal(
        ks[6], (3, D_MODEL), jnp.float32)
    ln_b = 0.05 * jax.random.normal(ks[7], (3, D_MODEL), jnp.float32)
    w1 = scale * jax.random.normal(ks[8], (D_MODEL, NUM_FFN), jnp.float32)
    b1 = scale * jax.random.normal(ks[9], (1, NUM_FFN), jnp.float32)
    w2 = scale * jax.random.normal(ks[10], (NUM_FFN, D_MODEL), jnp.float32)
    b2 = scale * jax.random.normal(ks[11], (1, D_MODEL), jnp.float32)

    params = (w_self, b_self, w_cross, b_cross, ln_g, ln_b, w1, b1, w2, b2)

    ref = jax.block_until_ready(
        reference_block(dec_in, enc_out, enc_valid_lens, params))

    # f32 operand path (v5e-friendly: no casts, exact softmax divide).
    packed_f32 = pack_params(params, jnp.float32)          # one-time repack
    out_f32 = jax.block_until_ready(
        decoder_block(dec_in, enc_out, enc_valid_lens, packed_f32))
    np.testing.assert_allclose(np.asarray(out_f32), np.asarray(ref),
                               rtol=5e-3, atol=5e-3)

    # bf16 stage-1 operand path (v6e/v7x): f32 accumulation, f32 softmax/LN.
    packed_bf16 = pack_params(params, jnp.bfloat16)        # one-time repack
    out_bf16 = jax.block_until_ready(
        decoder_block(dec_in, enc_out, enc_valid_lens, packed_bf16))
    np.testing.assert_allclose(np.asarray(out_bf16), np.asarray(ref),
                               rtol=2e-2, atol=2e-2)

    print("KERNEL_OK")
</pallas_src>

<mosaic_0001>
module attributes {stable_mosaic.version = 11 : i64} {
  func.func @decoder_block_kernel(%arg0: memref<16x1xf32, #tpu.memory_space<vmem>>, %arg1: memref<16x32xf32, #tpu.memory_space<vmem>>, %arg2: memref<24x32xf32, #tpu.memory_space<vmem>>, %arg3: memref<3x32x96xf32, #tpu.memory_space<vmem>>, %arg4: memref<128x32xf32, #tpu.memory_space<vmem>>, %arg5: memref<6x96xf32, #tpu.memory_space<vmem>>, %arg6: memref<16x40xf32, #tpu.memory_space<vmem>>, %arg7: memref<16x32xf32, #tpu.memory_space<vmem>>) attributes {dimension_semantics = [], scalar_prefetch = 0 : i64, scratch_operands = 0 : i64, tpu.core_type = #tpu.core_type<tc>} {
    %c0 = arith.constant 0 : index
    %c0_0 = arith.constant 0 : index
    %0 = vector.load %arg1[%c0, %c0_0] : memref<16x32xf32, #tpu.memory_space<vmem>>, vector<16x32xf32>
    %c0_1 = arith.constant 0 : index
    %c0_2 = arith.constant 0 : index
    %1 = vector.load %arg2[%c0_1, %c0_2] : memref<24x32xf32, #tpu.memory_space<vmem>>, vector<24x32xf32>
    %c0_3 = arith.constant 0 : index
    %c0_4 = arith.constant 0 : index
    %2 = vector.load %arg6[%c0_3, %c0_4] : memref<16x40xf32, #tpu.memory_space<vmem>>, vector<16x16xf32>
    %c0_5 = arith.constant 0 : index
    %c16 = arith.constant 16 : index
    %3 = vector.load %arg6[%c0_5, %c16] : memref<16x40xf32, #tpu.memory_space<vmem>>, vector<16x24xf32>
    %c0_6 = arith.constant 0 : index
    %c0_7 = arith.constant 0 : index
    %4 = vector.load %arg0[%c0_6, %c0_7] : memref<16x1xf32, #tpu.memory_space<vmem>>, vector<16x1xf32>
    %5 = vector.broadcast %4 : vector<16x1xf32> to vector<16x24xf32>
    %6 = arith.cmpf olt, %3, %5 : vector<16x24xf32>
    %cst = arith.constant 0.000000e+00 : f32
    %cst_8 = arith.constant -1.000000e+06 : f32
    %7 = vector.broadcast %cst : f32 to vector<16x24xf32>
    %8 = vector.broadcast %cst_8 : f32 to vector<16x24xf32>
    %9 = arith.select %6, %7, %8 : vector<16x24xi1>, vector<16x24xf32>
    %c0_9 = arith.constant 0 : index
    %c0_10 = arith.constant 0 : index
    %c0_11 = arith.constant 0 : index
    %10 = vector.load %arg3[%c0_9, %c0_10, %c0_11] : memref<3x32x96xf32, #tpu.memory_space<vmem>>, vector<1x32x96xf32>
    %11 = vector.shape_cast %10 : vector<1x32x96xf32> to vector<32x96xf32>
    %cst_12 = arith.constant dense<0.000000e+00> : vector<16x96xf32>
    %12 = tpu.matmul %0, %11, %cst_12 {dimension_numbers = #tpu.dot_dimension_numbers<[1], [0], [0], [1], [0, 0, 1, 1], [], []>} : vector<16x32xf32>, vector<32x96xf32>, vector<16x96xf32> -> vector<16x96xf32>
    %c0_13 = arith.constant 0 : index
    %c0_14 = arith.constant 0 : index
    %13 = vector.load %arg5[%c0_13, %c0_14] : memref<6x96xf32, #tpu.memory_space<vmem>>, vector<1x96xf32>
    %14 = vector.broadcast %13 : vector<1x96xf32> to vector<16x96xf32>
    %15 = arith.addf %12, %14 : vector<16x96xf32>
    %16 = vector.extract_strided_slice %15 {offsets = [0, 0], sizes = [16, 32], strides = [1, 1]} : vector<16x96xf32> to vector<16x32xf32>
    %cst_15 = arith.constant 0.353553385 : f32
    %17 = vector.broadcast %cst_15 : f32 to vector<16x32xf32>
    %18 = arith.mulf %16, %17 : vector<16x32xf32>
    %19 = vector.extract_strided_slice %15 {offsets = [0, 32], sizes = [16, 32], strides = [1, 1]} : vector<16x96xf32> to vector<16x32xf32>
    %20 = vector.extract_strided_slice %15 {offsets = [0, 64], sizes = [16, 32], strides = [1, 1]} : vector<16x96xf32> to vector<16x32xf32>
    %c0_16 = arith.constant 0 : index
    %c0_17 = arith.constant 0 : index
    %21 = vector.load %arg4[%c0_16, %c0_17] : memref<128x32xf32, #tpu.memory_space<vmem>>, vector<32x32xf32>
    %c2 = arith.constant 2 : index
    %c0_18 = arith.constant 0 : index
    %22 = vector.load %arg5[%c2, %c0_18] : memref<6x96xf32, #tpu.memory_space<vmem>>, vector<1x32xf32>
    %23 = vector.extract_strided_slice %18 {offsets = [0, 0], sizes = [16, 8], strides = [1, 1]} : vector<16x32xf32> to vector<16x8xf32>
    %24 = vector.extract_strided_slice %19 {offsets = [0, 0], sizes = [16, 8], strides = [1, 1]} : vector<16x32xf32> to vector<16x8xf32>
    %cst_19 = arith.constant dense<0.000000e+00> : vector<16x16xf32>
    %25 = tpu.matmul %23, %24, %cst_19 {dimension_numbers = #tpu.dot_dimension_numbers<[1], [1], [0], [0], [0, 0, 1, 0], [], []>} : vector<16x8xf32>, vector<16x8xf32>, vector<16x16xf32> -> vector<16x16xf32>
    %26 = arith.addf %25, %2 : vector<16x16xf32>
    %27 = vector.extract_strided_slice %18 {offsets = [0, 8], sizes = [16, 8], strides = [1, 1]} : vector<16x32xf32> to vector<16x8xf32>
    %28 = vector.extract_strided_slice %19 {offsets = [0, 8], sizes = [16, 8], strides = [1, 1]} : vector<16x32xf32> to vector<16x8xf32>
    %cst_20 = arith.constant dense<0.000000e+00> : vector<16x16xf32>
    %29 = tpu.matmul %27, %28, %cst_20 {dimension_numbers = #tpu.dot_dimension_numbers<[1], [1], [0], [0], [0, 0, 1, 0], [], []>} : vector<16x8xf32>, vector<16x8xf32>, vector<16x16xf32> -> vector<16x16xf32>
    %30 = arith.addf %29, %2 : vector<16x16xf32>
    %31 = vector.extract_strided_slice %18 {offsets = [0, 16], sizes = [16, 8], strides = [1, 1]} : vector<16x32xf32> to vector<16x8xf32>
    %32 = vector.extract_strided_slice %19 {offsets = [0, 16], sizes = [16, 8], strides = [1, 1]} : vector<16x32xf32> to vector<16x8xf32>
    %cst_21 = arith.constant dense<0.000000e+00> : vector<16x16xf32>
    %33 = tpu.matmul %31, %32, %cst_21 {dimension_numbers = #tpu.dot_dimension_numbers<[1], [1], [0], [0], [0, 0, 1, 0], [], []>} : vector<16x8xf32>, vector<16x8xf32>, vector<16x16xf32> -> vector<16x16xf32>
    %34 = arith.addf %33, %2 : vector<16x16xf32>
    %35 = vector.extract_strided_slice %18 {offsets = [0, 24], sizes = [16, 8], strides = [1, 1]} : vector<16x32xf32> to vector<16x8xf32>
    %36 = vector.extract_strided_slice %19 {offsets = [0, 24], sizes = [16, 8], strides = [1, 1]} : vector<16x32xf32> to vector<16x8xf32>
    %cst_22 = arith.constant dense<0.000000e+00> : vector<16x16xf32>
    %37 = tpu.matmul %35, %36, %cst_22 {dimension_numbers = #tpu.dot_dimension_numbers<[1], [1], [0], [0], [0, 0, 1, 0], [], []>} : vector<16x8xf32>, vector<16x8xf32>, vector<16x16xf32> -> vector<16x16xf32>
    %38 = arith.addf %37, %2 : vector<16x16xf32>
    %39 = tpu.concatenate %26, %30, %34, %38 in 0 : vector<16x16xf32>, vector<16x16xf32>, vector<16x16xf32>, vector<16x16xf32> -> vector<64x16xf32>
    %cst_23 = arith.constant dense<0xFF800000> : vector<64xf32>
    %40 = vector.multi_reduction <maximumf>, %39, %cst_23 [1] : vector<64x16xf32> to vector<64xf32>
    %41 = vector.shape_cast %40 : vector<64xf32> to vector<64x1xf32>
    %42 = vector.broadcast %41 : vector<64x1xf32> to vector<64x16xf32>
    %43 = arith.subf %39, %42 : vector<64x16xf32>
    %44 = math.exp %43 : vector<64x16xf32>
    %cst_24 = arith.constant dense<0.000000e+00> : vector<64xf32>
    %45 = vector.multi_reduction <add>, %44, %cst_24 [1] : vector<64x16xf32> to vector<64xf32>
    %46 = vector.shape_cast %45 : vector<64xf32> to vector<64x1xf32>
    %47 = vector.broadcast %46 : vector<64x1xf32> to vector<64x16xf32>
    %48 = arith.divf %44, %47 : vector<64x16xf32>
    %49 = vector.extract_strided_slice %48 {offsets = [0, 0], sizes = [16, 16], strides = [1, 1]} : vector<64x16xf32> to vector<16x16xf32>
    %50 = vector.extract_strided_slice %20 {offsets = [0, 0], sizes = [16, 8], strides = [1, 1]} : vector<16x32xf32> to vector<16x8xf32>
    %cst_25 = arith.constant dense<0.000000e+00> : vector<16x8xf32>
    %51 = tpu.matmul %49, %50, %cst_25 {dimension_numbers = #tpu.dot_dimension_numbers<[1], [0], [0], [1], [0, 0, 1, 1], [], []>} : vector<16x16xf32>, vector<16x8xf32>, vector<16x8xf32> -> vector<16x8xf32>
    %52 = vector.extract_strided_slice %48 {offsets = [16, 0], sizes = [16, 16], strides = [1, 1]} : vector<64x16xf32> to vector<16x16xf32>
    %53 = vector.extract_strided_slice %20 {offsets = [0, 8], sizes = [16, 8], strides = [1, 1]} : vector<16x32xf32> to vector<16x8xf32>
    %cst_26 = arith.constant dense<0.000000e+00> : vector<16x8xf32>
    %54 = tpu.matmul %52, %53, %cst_26 {dimension_numbers = #tpu.dot_dimension_numbers<[1], [0], [0], [1], [0, 0, 1, 1], [], []>} : vector<16x16xf32>, vector<16x8xf32>, vector<16x8xf32> -> vector<16x8xf32>
    %55 = vector.extract_strided_slice %48 {offsets = [32, 0], sizes = [16, 16], strides = [1, 1]} : vector<64x16xf32> to vector<16x16xf32>
    %56 = vector.extract_strided_slice %20 {offsets = [0, 16], sizes = [16, 8], strides = [1, 1]} : vector<16x32xf32> to vector<16x8xf32>
    %cst_27 = arith.constant dense<0.000000e+00> : vector<16x8xf32>
    %57 = tpu.matmul %55, %56, %cst_27 {dimension_numbers = #tpu.dot_dimension_numbers<[1], [0], [0], [1], [0, 0, 1, 1], [], []>} : vector<16x16xf32>, vector<16x8xf32>, vector<16x8xf32> -> vector<16x8xf32>
    %58 = vector.extract_strided_slice %48 {offsets = [48, 0], sizes = [16, 16], strides = [1, 1]} : vector<64x16xf32> to vector<16x16xf32>
    %59 = vector.extract_strided_slice %20 {offsets = [0, 24], sizes = [16, 8], strides = [1, 1]} : vector<16x32xf32> to vector<16x8xf32>
    %cst_28 = arith.constant dense<0.000000e+00> : vector<16x8xf32>
    %60 = tpu.matmul %58, %59, %cst_28 {dimension_numbers = #tpu.dot_dimension_numbers<[1], [0], [0], [1], [0, 0, 1, 1], [], []>} : vector<16x16xf32>, vector<16x8xf32>, vector<16x8xf32> -> vector<16x8xf32>
    %61 = tpu.concatenate %51, %54, %57, %60 in 1 : vector<16x8xf32>, vector<16x8xf32>, vector<16x8xf32>, vector<16x8xf32> -> vector<16x32xf32>
    %cst_29 = arith.constant dense<0.000000e+00> : vector<16x32xf32>
    %62 = tpu.matmul %61, %21, %cst_29 {dimension_numbers = #tpu.dot_dimension_numbers<[1], [0], [0], [1], [0, 0, 1, 1], [], []>} : vector<16x32xf32>, vector<32x32xf32>, vector<16x32xf32> -> vector<16x32xf32>
    %63 = vector.broadcast %22 : vector<1x32xf32> to vector<16x32xf32>
    %64 = arith.addf %62, %63 : vector<16x32xf32>
    %65 = arith.addf %0, %64 : vector<16x32xf32>
    %c4 = arith.constant 4 : index
    %c0_30 = arith.constant 0 : index
    %66 = vector.load %arg5[%c4, %c0_30] : memref<6x96xf32, #tpu.memory_space<vmem>>, vector<1x32xf32>
    %c5 = arith.constant 5 : index
    %c0_31 = arith.constant 0 : index
    %67 = vector.load %arg5[%c5, %c0_31] : memref<6x96xf32, #tpu.memory_space<vmem>>, vector<1x32xf32>
    %cst_32 = arith.constant dense<0.000000e+00> : vector<16xf32>
    %68 = vector.multi_reduction <add>, %65, %cst_32 [1] : vector<16x32xf32> to vector<16xf32>
    %69 = vector.shape_cast %68 : vector<16xf32> to vector<16x1xf32>
    %cst_33 = arith.constant 3.200000e+01 : f32
    %70 = vector.broadcast %cst_33 : f32 to vector<16x1xf32>
    %71 = arith.divf %69, %70 : vector<16x1xf32>
    %72 = vector.broadcast %71 : vector<16x1xf32> to vector<16x32xf32>
    %73 = arith.subf %65, %72 : vector<16x32xf32>
    %74 = arith.mulf %73, %73 : vector<16x32xf32>
    %cst_34 = arith.constant dense<0.000000e+00> : vector<16xf32>
    %75 = vector.multi_reduction <add>, %74, %cst_34 [1] : vector<16x32xf32> to vector<16xf32>
    %76 = vector.shape_cast %75 : vector<16xf32> to vector<16x1xf32>
    %cst_35 = arith.constant 3.200000e+01 : f32
    %77 = vector.broadcast %cst_35 : f32 to vector<16x1xf32>
    %78 = arith.divf %76, %77 : vector<16x1xf32>
    %79 = vector.broadcast %71 : vector<16x1xf32> to vector<16x32xf32>
    %80 = arith.subf %65, %79 : vector<16x32xf32>
    %cst_36 = arith.constant 9.99999974E-6 : f32
    %81 = vector.broadcast %cst_36 : f32 to vector<16x1xf32>
    %82 = arith.addf %78, %81 : vector<16x1xf32>
    %83 = math.rsqrt %82 : vector<16x1xf32>
    %84 = vector.broadcast %83 : vector<16x1xf32> to vector<16x32xf32>
    %85 = arith.mulf %80, %84 : vector<16x32xf32>
    %86 = vector.broadcast %66 : vector<1x32xf32> to vector<16x32xf32>
    %87 = arith.mulf %85, %86 : vector<16x32xf32>
    %88 = vector.broadcast %67 : vector<1x32xf32> to vector<16x32xf32>
    %89 = arith.addf %87, %88 : vector<16x32xf32>
    %c1 = arith.constant 1 : index
    %c0_37 = arith.constant 0 : index
    %c0_38 = arith.constant 0 : index
    %90 = vector.load %arg3[%c1, %c0_37, %c0_38] : memref<3x32x96xf32, #tpu.memory_space<vmem>>, vector<1x32x32xf32>
    %91 = vector.shape_cast %90 : vector<1x32x32xf32> to vector<32x32xf32>
    %cst_39 = arith.constant dense<0.000000e+00> : vector<16x32xf32>
    %92 = tpu.matmul %89, %91, %cst_39 {dimension_numbers = #tpu.dot_dimension_numbers<[1], [0], [0], [1], [0, 0, 1, 1], [], []>} : vector<16x32xf32>, vector<32x32xf32>, vector<16x32xf32> -> vector<16x32xf32>
    %c1_40 = arith.constant 1 : index
    %c0_41 = arith.constant 0 : index
    %93 = vector.load %arg5[%c1_40, %c0_41] : memref<6x96xf32, #tpu.memory_space<vmem>>, vector<1x32xf32>
    %94 = vector.broadcast %93 : vector<1x32xf32> to vector<16x32xf32>
    %95 = arith.addf %92, %94 : vector<16x32xf32>
    %cst_42 = arith.constant 0.353553385 : f32
    %96 = vector.broadcast %cst_42 : f32 to vector<16x32xf32>
    %97 = arith.mulf %95, %96 : vector<16x32xf32>
    %c1_43 = arith.constant 1 : index
    %c0_44 = arith.constant 0 : index
    %c32 = arith.constant 32 : index
    %98 = vector.load %arg3[%c1_43, %c0_44, %c32] : memref<3x32x96xf32, #tpu.memory_space<vmem>>, vector<1x32x64xf32>
    %99 = vector.shape_cast %98 : vector<1x32x64xf32> to vector<32x64xf32>
    %cst_45 = arith.constant dense<0.000000e+00> : vector<24x64xf32>
    %100 = tpu.matmul %1, %99, %cst_45 {dimension_numbers = #tpu.dot_dimension_numbers<[1], [0], [0], [1], [0, 0, 1, 1], [], []>} : vector<24x32xf32>, vector<32x64xf32>, vector<24x64xf32> -> vector<24x64xf32>
    %c1_46 = arith.constant 1 : index
    %c32_47 = arith.constant 32 : index
    %101 = vector.load %arg5[%c1_46, %c32_47] : memref<6x96xf32, #tpu.memory_space<vmem>>, vector<1x64xf32>
    %102 = vector.broadcast %101 : vector<1x64xf32> to vector<24x64xf32>
    %103 = arith.addf %100, %102 : vector<24x64xf32>
    %104 = vector.extract_strided_slice %103 {offsets = [0, 0], sizes = [24, 32], strides = [1, 1]} : vector<24x64xf32> to vector<24x32xf32>
    %105 = vector.extract_strided_slice %103 {offsets = [0, 32], sizes = [24, 32], strides = [1, 1]} : vector<24x64xf32> to vector<24x32xf32>
    %c32_48 = arith.constant 32 : index
    %c0_49 = arith.constant 0 : index
    %106 = vector.load %arg4[%c32_48, %c0_49] : memref<128x32xf32, #tpu.memory_space<vmem>>, vector<32x32xf32>
    %c2_50 = arith.constant 2 : index
    %c32_51 = arith.constant 32 : index
    %107 = vector.load %arg5[%c2_50, %c32_51] : memref<6x96xf32, #tpu.memory_space<vmem>>, vector<1x32xf32>
    %108 = vector.extract_strided_slice %97 {offsets = [0, 0], sizes = [16, 8], strides = [1, 1]} : vector<16x32xf32> to vector<16x8xf32>
    %109 = vector.extract_strided_slice %104 {offsets = [0, 0], sizes = [24, 8], strides = [1, 1]} : vector<24x32xf32> to vector<24x8xf32>
    %cst_52 = arith.constant dense<0.000000e+00> : vector<16x24xf32>
    %110 = tpu.matmul %108, %109, %cst_52 {dimension_numbers = #tpu.dot_dimension_numbers<[1], [1], [0], [0], [0, 0, 1, 0], [], []>} : vector<16x8xf32>, vector<24x8xf32>, vector<16x24xf32> -> vector<16x24xf32>
    %111 = arith.addf %110, %9 : vector<16x24xf32>
    %112 = vector.extract_strided_slice %97 {offsets = [0, 8], sizes = [16, 8], strides = [1, 1]} : vector<16x32xf32> to vector<16x8xf32>
    %113 = vector.extract_strided_slice %104 {offsets = [0, 8], sizes = [24, 8], strides = [1, 1]} : vector<24x32xf32> to vector<24x8xf32>
    %cst_53 = arith.constant dense<0.000000e+00> : vector<16x24xf32>
    %114 = tpu.matmul %112, %113, %cst_53 {dimension_numbers = #tpu.dot_dimension_numbers<[1], [1], [0], [0], [0, 0, 1, 0], [], []>} : vector<16x8xf32>, vector<24x8xf32>, vector<16x24xf32> -> vector<16x24xf32>
    %115 = arith.addf %114, %9 : vector<16x24xf32>
    %116 = vector.extract_strided_slice %97 {offsets = [0, 16], sizes = [16, 8], strides = [1, 1]} : vector<16x32xf32> to vector<16x8xf32>
    %117 = vector.extract_strided_slice %104 {offsets = [0, 16], sizes = [24, 8], strides = [1, 1]} : vector<24x32xf32> to vector<24x8xf32>
    %cst_54 = arith.constant dense<0.000000e+00> : vector<16x24xf32>
    %118 = tpu.matmul %116, %117, %cst_54 {dimension_numbers = #tpu.dot_dimension_numbers<[1], [1], [0], [0], [0, 0, 1, 0], [], []>} : vector<16x8xf32>, vector<24x8xf32>, vector<16x24xf32> -> vector<16x24xf32>
    %119 = arith.addf %118, %9 : vector<16x24xf32>
    %120 = vector.extract_strided_slice %97 {offsets = [0, 24], sizes = [16, 8], strides = [1, 1]} : vector<16x32xf32> to vector<16x8xf32>
    %121 = vector.extract_strided_slice %104 {offsets = [0, 24], sizes = [24, 8], strides = [1, 1]} : vector<24x32xf32> to vector<24x8xf32>
    %cst_55 = arith.constant dense<0.000000e+00> : vector<16x24xf32>
    %122 = tpu.matmul %120, %121, %cst_55 {dimension_numbers = #tpu.dot_dimension_numbers<[1], [1], [0], [0], [0, 0, 1, 0], [], []>} : vector<16x8xf32>, vector<24x8xf32>, vector<16x24xf32> -> vector<16x24xf32>
    %123 = arith.addf %122, %9 : vector<16x24xf32>
    %124 = tpu.concatenate %111, %115, %119, %123 in 0 : vector<16x24xf32>, vector<16x24xf32>, vector<16x24xf32>, vector<16x24xf32> -> vector<64x24xf32>
    %cst_56 = arith.constant dense<0xFF800000> : vector<64xf32>
    %125 = vector.multi_reduction <maximumf>, %124, %cst_56 [1] : vector<64x24xf32> to vector<64xf32>
    %126 = vector.shape_cast %125 : vector<64xf32> to vector<64x1xf32>
    %127 = vector.broadcast %126 : vector<64x1xf32> to vector<64x24xf32>
    %128 = arith.subf %124, %127 : vector<64x24xf32>
    %129 = math.exp %128 : vector<64x24xf32>
    %cst_57 = arith.constant dense<0.000000e+00> : vector<64xf32>
    %130 = vector.multi_reduction <add>, %129, %cst_57 [1] : vector<64x24xf32> to vector<64xf32>
    %131 = vector.shape_cast %130 : vector<64xf32> to vector<64x1xf32>
    %132 = vector.broadcast %131 : vector<64x1xf32> to vector<64x24xf32>
    %133 = arith.divf %129, %132 : vector<64x24xf32>
    %134 = vector.extract_strided_slice %133 {offsets = [0, 0], sizes = [16, 24], strides = [1, 1]} : vector<64x24xf32> to vector<16x24xf32>
    %135 = vector.extract_strided_slice %105 {offsets = [0, 0], sizes = [24, 8], strides = [1, 1]} : vector<24x32xf32> to vector<24x8xf32>
    %cst_58 = arith.constant dense<0.000000e+00> : vector<16x8xf32>
    %136 = tpu.matmul %134, %135, %cst_58 {dimension_numbers = #tpu.dot_dimension_numbers<[1], [0], [0], [1], [0, 0, 1, 1], [], []>} : vector<16x24xf32>, vector<24x8xf32>, vector<16x8xf32> -> vector<16x8xf32>
    %137 = vector.extract_strided_slice %133 {offsets = [16, 0], sizes = [16, 24], strides = [1, 1]} : vector<64x24xf32> to vector<16x24xf32>
    %138 = vector.extract_strided_slice %105 {offsets = [0, 8], sizes = [24, 8], strides = [1, 1]} : vector<24x32xf32> to vector<24x8xf32>
    %cst_59 = arith.constant dense<0.000000e+00> : vector<16x8xf32>
    %139 = tpu.matmul %137, %138, %cst_59 {dimension_numbers = #tpu.dot_dimension_numbers<[1], [0], [0], [1], [0, 0, 1, 1], [], []>} : vector<16x24xf32>, vector<24x8xf32>, vector<16x8xf32> -> vector<16x8xf32>
    %140 = vector.extract_strided_slice %133 {offsets = [32, 0], sizes = [16, 24], strides = [1, 1]} : vector<64x24xf32> to vector<16x24xf32>
    %141 = vector.extract_strided_slice %105 {offsets = [0, 16], sizes = [24, 8], strides = [1, 1]} : vector<24x32xf32> to vector<24x8xf32>
    %cst_60 = arith.constant dense<0.000000e+00> : vector<16x8xf32>
    %142 = tpu.matmul %140, %141, %cst_60 {dimension_numbers = #tpu.dot_dimension_numbers<[1], [0], [0], [1], [0, 0, 1, 1], [], []>} : vector<16x24xf32>, vector<24x8xf32>, vector<16x8xf32> -> vector<16x8xf32>
    %143 = vector.extract_strided_slice %133 {offsets = [48, 0], sizes = [16, 24], strides = [1, 1]} : vector<64x24xf32> to vector<16x24xf32>
    %144 = vector.extract_strided_slice %105 {offsets = [0, 24], sizes = [24, 8], strides = [1, 1]} : vector<24x32xf32> to vector<24x8xf32>
    %cst_61 = arith.constant dense<0.000000e+00> : vector<16x8xf32>
    %145 = tpu.matmul %143, %144, %cst_61 {dimension_numbers = #tpu.dot_dimension_numbers<[1], [0], [0], [1], [0, 0, 1, 1], [], []>} : vector<16x24xf32>, vector<24x8xf32>, vector<16x8xf32> -> vector<16x8xf32>
    %146 = tpu.concatenate %136, %139, %142, %145 in 1 : vector<16x8xf32>, vector<16x8xf32>, vector<16x8xf32>, vector<16x8xf32> -> vector<16x32xf32>
    %cst_62 = arith.constant dense<0.000000e+00> : vector<16x32xf32>
    %147 = tpu.matmul %146, %106, %cst_62 {dimension_numbers = #tpu.dot_dimension_numbers<[1], [0], [0], [1], [0, 0, 1, 1], [], []>} : vector<16x32xf32>, vector<32x32xf32>, vector<16x32xf32> -> vector<16x32xf32>
    %148 = vector.broadcast %107 : vector<1x32xf32> to vector<16x32xf32>
    %149 = arith.addf %147, %148 : vector<16x32xf32>
    %150 = arith.addf %89, %149 : vector<16x32xf32>
    %c4_63 = arith.constant 4 : index
    %c32_64 = arith.constant 32 : index
    %151 = vector.load %arg5[%c4_63, %c32_64] : memref<6x96xf32, #tpu.memory_space<vmem>>, vector<1x32xf32>
    %c5_65 = arith.constant 5 : index
    %c32_66 = arith.constant 32 : index
    %152 = vector.load %arg5[%c5_65, %c32_66] : memref<6x96xf32, #tpu.memory_space<vmem>>, vector<1x32xf32>
    %cst_67 = arith.constant dense<0.000000e+00> : vector<16xf32>
    %153 = vector.multi_reduction <add>, %150, %cst_67 [1] : vector<16x32xf32> to vector<16xf32>
    %154 = vector.shape_cast %153 : vector<16xf32> to vector<16x1xf32>
    %cst_68 = arith.constant 3.200000e+01 : f32
    %155 = vector.broadcast %cst_68 : f32 to vector<16x1xf32>
    %156 = arith.divf %154, %155 : vector<16x1xf32>
    %157 = vector.broadcast %156 : vector<16x1xf32> to vector<16x32xf32>
    %158 = arith.subf %150, %157 : vector<16x32xf32>
    %159 = arith.mulf %158, %158 : vector<16x32xf32>
    %cst_69 = arith.constant dense<0.000000e+00> : vector<16xf32>
    %160 = vector.multi_reduction <add>, %159, %cst_69 [1] : vector<16x32xf32> to vector<16xf32>
    %161 = vector.shape_cast %160 : vector<16xf32> to vector<16x1xf32>
    %cst_70 = arith.constant 3.200000e+01 : f32
    %162 = vector.broadcast %cst_70 : f32 to vector<16x1xf32>
    %163 = arith.divf %161, %162 : vector<16x1xf32>
    %164 = vector.broadcast %156 : vector<16x1xf32> to vector<16x32xf32>
    %165 = arith.subf %150, %164 : vector<16x32xf32>
    %cst_71 = arith.constant 9.99999974E-6 : f32
    %166 = vector.broadcast %cst_71 : f32 to vector<16x1xf32>
    %167 = arith.addf %163, %166 : vector<16x1xf32>
    %168 = math.rsqrt %167 : vector<16x1xf32>
    %169 = vector.broadcast %168 : vector<16x1xf32> to vector<16x32xf32>
    %170 = arith.mulf %165, %169 : vector<16x32xf32>
    %171 = vector.broadcast %151 : vector<1x32xf32> to vector<16x32xf32>
    %172 = arith.mulf %170, %171 : vector<16x32xf32>
    %173 = vector.broadcast %152 : vector<1x32xf32> to vector<16x32xf32>
    %174 = arith.addf %172, %173 : vector<16x32xf32>
    %c2_72 = arith.constant 2 : index
    %c0_73 = arith.constant 0 : index
    %c0_74 = arith.constant 0 : index
    %175 = vector.load %arg3[%c2_72, %c0_73, %c0_74] : memref<3x32x96xf32, #tpu.memory_space<vmem>>, vector<1x32x64xf32>
    %176 = vector.shape_cast %175 : vector<1x32x64xf32> to vector<32x64xf32>
    %cst_75 = arith.constant dense<0.000000e+00> : vector<16x64xf32>
    %177 = tpu.matmul %174, %176, %cst_75 {dimension_numbers = #tpu.dot_dimension_numbers<[1], [0], [0], [1], [0, 0, 1, 1], [], []>} : vector<16x32xf32>, vector<32x64xf32>, vector<16x64xf32> -> vector<16x64xf32>
    %c3 = arith.constant 3 : index
    %c0_76 = arith.constant 0 : index
    %178 = vector.load %arg5[%c3, %c0_76] : memref<6x96xf32, #tpu.memory_space<vmem>>, vector<1x64xf32>
    %179 = vector.broadcast %178 : vector<1x64xf32> to vector<16x64xf32>
    %180 = arith.addf %177, %179 : vector<16x64xf32>
    %cst_77 = arith.constant 0.000000e+00 : f32
    %181 = vector.broadcast %cst_77 : f32 to vector<16x64xf32>
    %182 = arith.maximumf %180, %181 : vector<16x64xf32>
    %c64 = arith.constant 64 : index
    %c0_78 = arith.constant 0 : index
    %183 = vector.load %arg4[%c64, %c0_78] : memref<128x32xf32, #tpu.memory_space<vmem>>, vector<64x32xf32>
    %cst_79 = arith.constant dense<0.000000e+00> : vector<16x32xf32>
    %184 = tpu.matmul %182, %183, %cst_79 {dimension_numbers = #tpu.dot_dimension_numbers<[1], [0], [0], [1], [0, 0, 1, 1], [], []>} : vector<16x64xf32>, vector<64x32xf32>, vector<16x32xf32> -> vector<16x32xf32>
    %c2_80 = arith.constant 2 : index
    %c64_81 = arith.constant 64 : index
    %185 = vector.load %arg5[%c2_80, %c64_81] : memref<6x96xf32, #tpu.memory_space<vmem>>, vector<1x32xf32>
    %186 = vector.broadcast %185 : vector<1x32xf32> to vector<16x32xf32>
    %187 = arith.addf %184, %186 : vector<16x32xf32>
    %188 = arith.addf %174, %187 : vector<16x32xf32>
    %c4_82 = arith.constant 4 : index
    %c64_83 = arith.constant 64 : index
    %189 = vector.load %arg5[%c4_82, %c64_83] : memref<6x96xf32, #tpu.memory_space<vmem>>, vector<1x32xf32>
    %c5_84 = arith.constant 5 : index
    %c64_85 = arith.constant 64 : index
    %190 = vector.load %arg5[%c5_84, %c64_85] : memref<6x96xf32, #tpu.memory_space<vmem>>, vector<1x32xf32>
    %cst_86 = arith.constant dense<0.000000e+00> : vector<16xf32>
    %191 = vector.multi_reduction <add>, %188, %cst_86 [1] : vector<16x32xf32> to vector<16xf32>
    %192 = vector.shape_cast %191 : vector<16xf32> to vector<16x1xf32>
    %cst_87 = arith.constant 3.200000e+01 : f32
    %193 = vector.broadcast %cst_87 : f32 to vector<16x1xf32>
    %194 = arith.divf %192, %193 : vector<16x1xf32>
    %195 = vector.broadcast %194 : vector<16x1xf32> to vector<16x32xf32>
    %196 = arith.subf %188, %195 : vector<16x32xf32>
    %197 = arith.mulf %196, %196 : vector<16x32xf32>
    %cst_88 = arith.constant dense<0.000000e+00> : vector<16xf32>
    %198 = vector.multi_reduction <add>, %197, %cst_88 [1] : vector<16x32xf32> to vector<16xf32>
    %199 = vector.shape_cast %198 : vector<16xf32> to vector<16x1xf32>
    %cst_89 = arith.constant 3.200000e+01 : f32
    %200 = vector.broadcast %cst_89 : f32 to vector<16x1xf32>
    %201 = arith.divf %199, %200 : vector<16x1xf32>
    %202 = vector.broadcast %194 : vector<16x1xf32> to vector<16x32xf32>
    %203 = arith.subf %188, %202 : vector<16x32xf32>
    %cst_90 = arith.constant 9.99999974E-6 : f32
    %204 = vector.broadcast %cst_90 : f32 to vector<16x1xf32>
    %205 = arith.addf %201, %204 : vector<16x1xf32>
    %206 = math.rsqrt %205 : vector<16x1xf32>
    %207 = vector.broadcast %206 : vector<16x1xf32> to vector<16x32xf32>
    %208 = arith.mulf %203, %207 : vector<16x32xf32>
    %209 = vector.broadcast %189 : vector<1x32xf32> to vector<16x32xf32>
    %210 = arith.mulf %208, %209 : vector<16x32xf32>
    %211 = vector.broadcast %190 : vector<1x32xf32> to vector<16x32xf32>
    %212 = arith.addf %210, %211 : vector<16x32xf32>
    %c0_91 = arith.constant 0 : index
    %c0_92 = arith.constant 0 : index
    %213 = vector.load %arg7[%c0_91, %c0_92] : memref<16x32xf32, #tpu.memory_space<vmem>>, vector<16x32xf32>
    tpu.vector_store %arg7[%c0_91, %c0_92], %212 {strides = array<i32>} : memref<16x32xf32, #tpu.memory_space<vmem>>, vector<16x32xf32>,
    return
  }
}

</mosaic_0001>

<llo_original>
// kernel: decoder_block.1
$region0: #{decoder_block.1}
  #allocation0 [shape = 'u32[]', space=smem, size = 0x4, offset = 0x4, fixed_abs, tag = 'smem constant byte address 0x4 - core index']
  #allocation1 [shape = 'u32[72,128]{1,0:T(1,128)}', space=vmem, size = 0x9000, scoped, tag = 'internal scratch']
  %s0 = inlined_call_operand.vmem [shape: f32[16,1], index: 0, kind: input, shape index: {}]
  %s1 = inlined_call_operand.vmem [shape: f32[16,32], index: 1, kind: input, shape index: {}]
  %s2 = inlined_call_operand.vmem [shape: f32[24,32], index: 2, kind: input, shape index: {}]
  %s3 = inlined_call_operand.vmem [shape: f32[3,32,96], index: 3, kind: input, shape index: {}]
  %s4 = inlined_call_operand.vmem [shape: f32[128,32], index: 4, kind: input, shape index: {}]
  %s5 = inlined_call_operand.vmem [shape: f32[6,96], index: 5, kind: input, shape index: {}]
  %s6 = inlined_call_operand.vmem [shape: f32[16,40], index: 6, kind: input, shape index: {}]
  %s7 = inlined_call_operand.hbm [shape: f32[16,32], index: 7, kind: output, shape index: {}]
  %s8 = sld [smem:[#allocation0]]
  $region38: #{decoder_block.1} parent=0
    _
  %s10 = ssub.s32 1, %s8
  %s11 = scalar_select 0, %s10, %s8
  $region1: #{decoder_block.1} parent=0
    #allocation2 [shape = 'u8[8192]{0}', space=vmem, size = 0x2000, scoped, tag = 'output window, operand 0, single buffered']
    #allocation3 [shape = 's32[1]{0}', space=sflag, size = 0x4, scoped, tag = 'scoped memory for decoder_block.1']
    %12 = vsyncpa [#allocation3], 0
    // Predicated region
    $region2: #{decoder_block.1} parent=1 // pred_check
      _
    $region3: #{decoder_block.1} parent=1 // pred_check_branch
      %14 = sbr.rel (0) target = $region5
    $region4: #{decoder_block.1} parent=1 // pred_region
      _
    $region5: #{decoder_block.1} parent=1 // pred_fallthru
      _
    // Predicated region
    $region6: #{decoder_block.1} parent=1 // pred_check
      _
    $region7: #{decoder_block.1} parent=1 // pred_check_branch
      %16 = sbr.rel (0) target = $region9
    $region8: #{decoder_block.1} parent=1 // pred_region
      _
    $region9: #{decoder_block.1} parent=1 // pred_fallthru
      _
    // Predicated region
    $region10: #{decoder_block.1} parent=1 // pred_check
      _
    $region11: #{decoder_block.1} parent=1 // pred_check_branch
      %18 = sbr.rel (0) target = $region13
    $region12: #{decoder_block.1} parent=1 // pred_region
      _
    $region13: #{decoder_block.1} parent=1 // pred_fallthru
      _
    // Predicated region
    $region14: #{decoder_block.1} parent=1 // pred_check
      _
    $region15: #{decoder_block.1} parent=1 // pred_check_branch
      %20 = sbr.rel (0) target = $region17
    $region16: #{decoder_block.1} parent=1 // pred_region
      _
    $region17: #{decoder_block.1} parent=1 // pred_fallthru
      _
    // Predicated region
    $region18: #{decoder_block.1} parent=1 // pred_check
      _
    $region19: #{decoder_block.1} parent=1 // pred_check_branch
      %22 = sbr.rel (0) target = $region21
    $region20: #{decoder_block.1} parent=1 // pred_region
      _
    $region21: #{decoder_block.1} parent=1 // pred_fallthru
      _
    // Predicated region
    $region22: #{decoder_block.1} parent=1 // pred_check
      _
    $region23: #{decoder_block.1} parent=1 // pred_check_branch
      %24 = sbr.rel (0) target = $region25
    $region24: #{decoder_block.1} parent=1 // pred_region
      _
    $region25: #{decoder_block.1} parent=1 // pred_fallthru
      _
    // Predicated region
    $region26: #{decoder_block.1} parent=1 // pred_check
      _
    $region27: #{decoder_block.1} parent=1 // pred_check_branch
      %26 = sbr.rel (0) target = $region29
    $region28: #{decoder_block.1} parent=1 // pred_region
      _
    $region29: #{decoder_block.1} parent=1 // pred_fallthru
      _
    %v27 = vld [vmem:[%s1] sm:$0xff]
    %v28 = vld [vmem:[%s1 + $0x8] sm:$0xff]
    %v29 = vld [vmem:[%s2] sm:$0xff]
    %v30 = vld [vmem:[%s2 + $0x8] sm:$0xff]
    %v31 = vld [vmem:[%s2 + $0x10] sm:$0xff]
    %v32 = vld [vmem:[%s6] sm:$0xff]
    %v33 = vld [vmem:[%s6 + $0x8] sm:$0xff]
    %v34 = vld [vmem:[%s0] sm:$0xff]
    %v35 = vld [vmem:[%s0 + $0x8] sm:$0xff]
    %37 = vset.pattern.permute.xlu0 0
    %38 = vperm.xlu0 %37, %v34
    %v39 = vpop.permute.xlu0 %38
    %42 = vset.pattern.permute.xlu0 0
    %43 = vperm.xlu0 %42, %v35
    %v44 = vpop.permute.xlu0 %43
    %vm46 = vcmp.lt.f32.partialorder %v32, %v39
    %vm47 = vcmp.lt.f32.partialorder %v33, %v44
    %v48 = vsel %vm46, 0.0, -1000000.0
    %v49 = vsel %vm47, 0.0, -1000000.0
    %v50 = vld [vmem:[%s3] sm:$0xff]
    %v51 = vld [vmem:[%s3 + $0x8] sm:$0xff]
    %v52 = vld [vmem:[%s3 + $0x10] sm:$0xff]
    %v53 = vld [vmem:[%s3 + $0x18] sm:$0xff]
    %v54 = vld [vmem:[%s5] sm:$0x1]
    %v55 = vperm.slane %v54, 0
    %vm56 = vcmask 261120
    %v58 = vsel %vm56, %v27, 0
    %v61 = vsel %vm56, %v28, 0
    %63 = vmatpush.msra.mxu0 0.0
    %64 = vmatpush.msra.mxu0 0.0
    %65 = vmatpush.msra.mxu0 0.0
    %66 = vmatpush.msra.mxu0 0.0
    %67 = vmatpush.msra.mxu0 0.0
    %68 = vmatpush.msra.mxu0 0.0
    %69 = vmatpush.msra.mxu0 0.0
    %70 = vmatpush.msra.mxu0 0.0
    %71 = vmatpush.msra.mxu0 0.0
    %72 = vmatpush.msra.mxu0 0.0
    %73 = vmatpush.msra.mxu0 0.0
    %74 = vmatpush.msra.mxu0 0.0
    %75 = vmatpush.msra.mxu0 %v53
    %76 = vmatpush.msra.mxu0 %v52
    %77 = vmatpush.msra.mxu0 %v51
    %78 = vmatpush.msra.mxu0 %v50
    %79 = vmatmul.f32.gmra.mxu0 %v58
    %v80 = vpop.f32.mrf.mxu0
    %v81 = vadd.f32 %v55, %v80
    %82 = vmatmul.f32.gmra.mxu0 %v61
    %v83 = vpop.f32.mrf.mxu0
    %v84 = vadd.f32 %v55, %v83
    %85 = vdwg.mxu0
    %v86 = vmul.f32 %v81, 0.35355338
    %v87 = vmul.f32 %v84, 0.35355338
    %v88 = vld [vmem:[%s4] sm:$0xff]
    %v89 = vld [vmem:[%s4 + $0x8] sm:$0xff]
    %v90 = vld [vmem:[%s4 + $0x10] sm:$0xff]
    %v91 = vld [vmem:[%s4 + $0x18] sm:$0xff]
    %v92 = vld [vmem:[%s5 + $0x2] sm:$0x1]
    %95 = vrot.lane.b32.xlu0 %v81, 96
    %v96 = vpop.permute.xlu0 %95
    %97 = vrot.lane.b32.xlu0 %v84, 96
    %v98 = vpop.permute.xlu0 %97
    %vm99 = vcmask 64512
    %v101 = vsel %vm99, %v86, 0
    %v104 = vsel %vm99, %v87, 0
    %v106 = vsel %vm99, %v96, 0
    %v108 = vsel %vm99, %v98, 0
    %110 = vmatpush.xpose.msra.mxu0 0.0
    %111 = vmatpush.xpose.msra.mxu0 0.0
    %112 = vmatpush.xpose.msra.mxu0 0.0
    %113 = vmatpush.xpose.msra.mxu0 0.0
    %114 = vmatpush.xpose.msra.mxu0 0.0
    %115 = vmatpush.xpose.msra.mxu0 0.0
    %116 = vmatpush.xpose.msra.mxu0 0.0
    %117 = vmatpush.xpose.msra.mxu0 0.0
    %118 = vmatpush.xpose.msra.mxu0 0.0
    %119 = vmatpush.xpose.msra.mxu0 0.0
    %120 = vmatpush.xpose.msra.mxu0 0.0
    %121 = vmatpush.xpose.msra.mxu0 0.0
    %122 = vmatpush.xpose.msra.mxu0 0.0
    %123 = vmatpush.xpose.msra.mxu0 0.0
    %124 = vmatpush.xpose.msra.mxu0 %v108
    %125 = vmatpush.xpose.msra.mxu0 %v106
    %126 = vmatmul.f32.gmra.mxu0 %v101
    %v127 = vpop.f32.mrf.mxu0
    %v128 = vadd.f32 %v32, %v127
    %129 = vmatmul.f32.gmra.mxu0 %v104
    %v130 = vpop.f32.mrf.mxu0
    %v131 = vadd.f32 %v33, %v130
    %132 = vdwg.mxu0
    %133 = vrot.lane.b32.xlu0 %v86, 120
    %v134 = vpop.permute.xlu0 %133
    %135 = vrot.lane.b32.xlu0 %v87, 120
    %v136 = vpop.permute.xlu0 %135
    %137 = vrot.lane.b32.xlu0 %v81, 88
    %v138 = vpop.permute.xlu0 %137
    %139 = vrot.lane.b32.xlu0 %v84, 88
    %v140 = vpop.permute.xlu0 %139
    %v141 = vsel %vm99, %v134, 0
    %v143 = vsel %vm99, %v136, 0
    %v145 = vsel %vm99, %v138, 0
    %v147 = vsel %vm99, %v140, 0
    %149 = vmatpush.xpose.msra.mxu0 0.0
    %150 = vmatpush.xpose.msra.mxu0 0.0
    %151 = vmatpush.xpose.msra.mxu0 0.0
    %152 = vmatpush.xpose.msra.mxu0 0.0
    %153 = vmatpush.xpose.msra.mxu0 0.0
    %154 = vmatpush.xpose.msra.mxu0 0.0
    %155 = vmatpush.xpose.msra.mxu0 0.0
    %156 = vmatpush.xpose.msra.mxu0 0.0
    %157 = vmatpush.xpose.msra.mxu0 0.0
    %158 = vmatpush.xpose.msra.mxu0 0.0
    %159 = vmatpush.xpose.msra.mxu0 0.0
    %160 = vmatpush.xpose.msra.mxu0 0.0
    %161 = vmatpush.xpose.msra.mxu0 0.0
    %162 = vmatpush.xpose.msra.mxu0 0.0
    %163 = vmatpush.xpose.msra.mxu0 %v147
    %164 = vmatpush.xpose.msra.mxu0 %v145
    %165 = vmatmul.f32.gmra.mxu0 %v141
    %v166 = vpop.f32.mrf.mxu0
    %v167 = vadd.f32 %v32, %v166
    %168 = vmatmul.f32.gmra.mxu0 %v143
    %v169 = vpop.f32.mrf.mxu0
    %v170 = vadd.f32 %v33, %v169
    %171 = vdwg.mxu0
    %172 = vrot.lane.b32.xlu0 %v86, 112
    %v173 = vpop.permute.xlu0 %172
    %174 = vrot.lane.b32.xlu0 %v87, 112
    %v175 = vpop.permute.xlu0 %174
    %176 = vrot.lane.b32.xlu0 %v81, 80
    %v177 = vpop.permute.xlu0 %176
    %178 = vrot.lane.b32.xlu0 %v84, 80
    %v179 = vpop.permute.xlu0 %178
    %v180 = vsel %vm99, %v173, 0
    %v182 = vsel %vm99, %v175, 0
    %v184 = vsel %vm99, %v177, 0
    %v186 = vsel %vm99, %v179, 0
    %188 = vmatpush.xpose.msra.mxu0 0.0
    %189 = vmatpush.xpose.msra.mxu0 0.0
    %190 = vmatpush.xpose.msra.mxu0 0.0
    %191 = vmatpush.xpose.msra.mxu0 0.0
    %192 = vmatpush.xpose.msra.mxu0 0.0
    %193 = vmatpush.xpose.msra.mxu0 0.0
    %194 = vmatpush.xpose.msra.mxu0 0.0
    %195 = vmatpush.xpose.msra.mxu0 0.0
    %196 = vmatpush.xpose.msra.mxu0 0.0
    %197 = vmatpush.xpose.msra.mxu0 0.0
    %198 = vmatpush.xpose.msra.mxu0 0.0
    %199 = vmatpush.xpose.msra.mxu0 0.0
    %200 = vmatpush.xpose.msra.mxu0 0.0
    %201 = vmatpush.xpose.msra.mxu0 0.0
    %202 = vmatpush.xpose.msra.mxu0 %v186
    %203 = vmatpush.xpose.msra.mxu0 %v184
    %204 = vmatmul.f32.gmra.mxu0 %v180
    %v205 = vpop.f32.mrf.mxu0
    %v206 = vadd.f32 %v32, %v205
    %207 = vmatmul.f32.gmra.mxu0 %v182
    %v208 = vpop.f32.mrf.mxu0
    %v209 = vadd.f32 %v33, %v208
    %210 = vdwg.mxu0
    %211 = vrot.lane.b32.xlu0 %v86, 104
    %v212 = vpop.permute.xlu0 %211
    %213 = vrot.lane.b32.xlu0 %v87, 104
    %v214 = vpop.permute.xlu0 %213
    %215 = vrot.lane.b32.xlu0 %v81, 72
    %v216 = vpop.permute.xlu0 %215
    %217 = vrot.lane.b32.xlu0 %v84, 72
    %v218 = vpop.permute.xlu0 %217
    %v219 = vsel %vm99, %v212, 0
    %v221 = vsel %vm99, %v214, 0
    %v223 = vsel %vm99, %v216, 0
    %v225 = vsel %vm99, %v218, 0
    %227 = vmatpush.xpose.msra.mxu0 0.0
    %228 = vmatpush.xpose.msra.mxu0 0.0
    %229 = vmatpush.xpose.msra.mxu0 0.0
    %230 = vmatpush.xpose.msra.mxu0 0.0
    %231 = vmatpush.xpose.msra.mxu0 0.0
    %232 = vmatpush.xpose.msra.mxu0 0.0
    %233 = vmatpush.xpose.msra.mxu0 0.0
    %234 = vmatpush.xpose.msra.mxu0 0.0
    %235 = vmatpush.xpose.msra.mxu0 0.0
    %236 = vmatpush.xpose.msra.mxu0 0.0
    %237 = vmatpush.xpose.msra.mxu0 0.0
    %238 = vmatpush.xpose.msra.mxu0 0.0
    %239 = vmatpush.xpose.msra.mxu0 0.0
    %240 = vmatpush.xpose.msra.mxu0 0.0
    %241 = vmatpush.xpose.msra.mxu0 %v225
    %242 = vmatpush.xpose.msra.mxu0 %v223
    %243 = vmatmul.f32.gmra.mxu0 %v219
    %v244 = vpop.f32.mrf.mxu0
    %v245 = vadd.f32 %v32, %v244
    %246 = vmatmul.f32.gmra.mxu0 %v221
    %v247 = vpop.f32.mrf.mxu0
    %v248 = vadd.f32 %v33, %v247
    %249 = vdwg.mxu0
    %vm250 = vcmask 130048
    %v251 = vsel %vm250, %v128, -inf
    %252 = vmax.xlane.f32.xlu0 %v251
    %v253 = vpop.xlane.xlu0 %252
    %v254 = vsel %vm250, %v131, -inf
    %255 = vmax.xlane.f32.xlu0 %v254
    %v256 = vpop.xlane.xlu0 %255
    %v257 = vsel %vm250, %v167, -inf
    %258 = vmax.xlane.f32.xlu0 %v257
    %v259 = vpop.xlane.xlu0 %258
    %v260 = vsel %vm250, %v170, -inf
    %261 = vmax.xlane.f32.xlu0 %v260
    %v262 = vpop.xlane.xlu0 %261
    %v263 = vsel %vm250, %v206, -inf
    %264 = vmax.xlane.f32.xlu0 %v263
    %v265 = vpop.xlane.xlu0 %264
    %v266 = vsel %vm250, %v209, -inf
    %267 = vmax.xlane.f32.xlu0 %v266
    %v268 = vpop.xlane.xlu0 %267
    %v269 = vsel %vm250, %v245, -inf
    %270 = vmax.xlane.f32.xlu0 %v269
    %v271 = vpop.xlane.xlu0 %270
    %v272 = vsel %vm250, %v248, -inf
    %273 = vmax.xlane.f32.xlu0 %v272
    %v274 = vpop.xlane.xlu0 %273
    %v275 = vsub.f32 %v128, %v253
    %v276 = vsub.f32 %v131, %v256
    %v277 = vsub.f32 %v167, %v259
    %v278 = vsub.f32 %v170, %v262
    %v279 = vsub.f32 %v206, %v265
    %v280 = vsub.f32 %v209, %v268
    %v281 = vsub.f32 %v245, %v271
    %v282 = vsub.f32 %v248, %v274
    %v283 = vmul.f32 %v275, 1.442695
    %v284 = vpow.pop %v283
    %v285 = vmul.f32 %v276, 1.442695
    %v286 = vpow.pop %v285
    %v287 = vmul.f32 %v277, 1.442695
    %v288 = vpow.pop %v287
    %v289 = vmul.f32 %v278, 1.442695
    %v290 = vpow.pop %v289
    %v291 = vmul.f32 %v279, 1.442695
    %v292 = vpow.pop %v291
    %v293 = vmul.f32 %v280, 1.442695
    %v294 = vpow.pop %v293
    %v295 = vmul.f32 %v281, 1.442695
    %v296 = vpow.pop %v295
    %v297 = vmul.f32 %v282, 1.442695
    %v298 = vpow.pop %v297
    %v299 = vsel %vm250, %v284, 0.0
    %300 = vadd.xlane.f32.xlu0 %v299
    %v301 = vpop.xlane.xlu0 %300
    %v302 = vsel %vm250, %v286, 0.0
    %303 = vadd.xlane.f32.xlu0 %v302
    %v304 = vpop.xlane.xlu0 %303
    %v305 = vsel %vm250, %v288, 0.0
    %306 = vadd.xlane.f32.xlu0 %v305
    %v307 = vpop.xlane.xlu0 %306
    %v308 = vsel %vm250, %v290, 0.0
    %309 = vadd.xlane.f32.xlu0 %v308
    %v310 = vpop.xlane.xlu0 %309
    %v311 = vsel %vm250, %v292, 0.0
    %312 = vadd.xlane.f32.xlu0 %v311
    %v313 = vpop.xlane.xlu0 %312
    %v314 = vsel %vm250, %v294, 0.0
    %315 = vadd.xlane.f32.xlu0 %v314
    %v316 = vpop.xlane.xlu0 %315
    %v317 = vsel %vm250, %v296, 0.0
    %318 = vadd.xlane.f32.xlu0 %v317
    %v319 = vpop.xlane.xlu0 %318
    %v320 = vsel %vm250, %v298, 0.0
    %321 = vadd.xlane.f32.xlu0 %v320
    %v322 = vpop.xlane.xlu0 %321
    %v323 = vrcp.pop %v301
    %v324 = vmul.f32 %v301, %v323
    %v325 = vsub.f32 1.0, %v324
    %v326 = vmul.f32 %v323, %v325
    %v327 = vadd.f32 %v323, %v326
    %vm328 = vweird.f32 %v301
    %vm329 = vweird.f32 %v323
    %vm330 = vmor %vm328, %vm329
    %v331 = vsel %vm330, %v323, %v327
    %v332 = vand.u32 2147483647, %v301
    %vm333 = vcmp.eq.f32.partialorder %v332, 8.507059e+37
    %v334 = vand.u32 %v301, 2147483648
    %v335 = vor.u32 1.1754944e-38, %v334
    %v336 = vsel %vm333, %v335, %v331
    %v337 = vmul.f32 %v284, %v336
    %v338 = vrcp.pop %v304
    %v339 = vmul.f32 %v304, %v338
    %v340 = vsub.f32 1.0, %v339
    %v341 = vmul.f32 %v338, %v340
    %v342 = vadd.f32 %v338, %v341
    %vm343 = vweird.f32 %v304
    %vm344 = vweird.f32 %v338
    %vm345 = vmor %vm343, %vm344
    %v346 = vsel %vm345, %v338, %v342
    %v347 = vand.u32 2147483647, %v304
    %vm348 = vcmp.eq.f32.partialorder %v347, 8.507059e+37
    %v349 = vand.u32 %v304, 2147483648
    %v350 = vor.u32 1.1754944e-38, %v349
    %v351 = vsel %vm348, %v350, %v346
    %v352 = vmul.f32 %v286, %v351
    %v353 = vrcp.pop %v307
    %v354 = vmul.f32 %v307, %v353
    %v355 = vsub.f32 1.0, %v354
    %v356 = vmul.f32 %v353, %v355
    %v357 = vadd.f32 %v353, %v356
    %vm358 = vweird.f32 %v307
    %vm359 = vweird.f32 %v353
    %vm360 = vmor %vm358, %vm359
    %v361 = vsel %vm360, %v353, %v357
    %v362 = vand.u32 2147483647, %v307
    %vm363 = vcmp.eq.f32.partialorder %v362, 8.507059e+37
    %v364 = vand.u32 %v307, 2147483648
    %v365 = vor.u32 1.1754944e-38, %v364
    %v366 = vsel %vm363, %v365, %v361
    %v367 = vmul.f32 %v288, %v366
    %v368 = vrcp.pop %v310
    %v369 = vmul.f32 %v310, %v368
    %v370 = vsub.f32 1.0, %v369
    %v371 = vmul.f32 %v368, %v370
    %v372 = vadd.f32 %v368, %v371
    %vm373 = vweird.f32 %v310
    %vm374 = vweird.f32 %v368
    %vm375 = vmor %vm373, %vm374
    %v376 = vsel %vm375, %v368, %v372
    %v377 = vand.u32 2147483647, %v310
    %vm378 = vcmp.eq.f32.partialorder %v377, 8.507059e+37
    %v379 = vand.u32 %v310, 2147483648
    %v380 = vor.u32 1.1754944e-38, %v379
    %v381 = vsel %vm378, %v380, %v376
    %v382 = vmul.f32 %v290, %v381
    %v383 = vrcp.pop %v313
    %v384 = vmul.f32 %v313, %v383
    %v385 = vsub.f32 1.0, %v384
    %v386 = vmul.f32 %v383, %v385
    %v387 = vadd.f32 %v383, %v386
    %vm388 = vweird.f32 %v313
    %vm389 = vweird.f32 %v383
    %vm390 = vmor %vm388, %vm389
    %v391 = vsel %vm390, %v383, %v387
    %v392 = vand.u32 2147483647, %v313
    %vm393 = vcmp.eq.f32.partialorder %v392, 8.507059e+37
    %v394 = vand.u32 %v313, 2147483648
    %v395 = vor.u32 1.1754944e-38, %v394
    %v396 = vsel %vm393, %v395, %v391
    %v397 = vmul.f32 %v292, %v396
    %v398 = vrcp.pop %v316
    %v399 = vmul.f32 %v316, %v398
    %v400 = vsub.f32 1.0, %v399
    %v401 = vmul.f32 %v398, %v400
    %v402 = vadd.f32 %v398, %v401
    %vm403 = vweird.f32 %v316
    %vm404 = vweird.f32 %v398
    %vm405 = vmor %vm403, %vm404
    %v406 = vsel %vm405, %v398, %v402
    %v407 = vand.u32 2147483647, %v316
    %vm408 = vcmp.eq.f32.partialorder %v407, 8.507059e+37
    %v409 = vand.u32 %v316, 2147483648
    %v410 = vor.u32 1.1754944e-38, %v409
    %v411 = vsel %vm408, %v410, %v406
    %v412 = vmul.f32 %v294, %v411
    %v413 = vrcp.pop %v319
    %v414 = vmul.f32 %v319, %v413
    %v415 = vsub.f32 1.0, %v414
    %v416 = vmul.f32 %v413, %v415
    %v417 = vadd.f32 %v413, %v416
    %vm418 = vweird.f32 %v319
    %vm419 = vweird.f32 %v413
    %vm420 = vmor %vm418, %vm419
    %v421 = vsel %vm420, %v413, %v417
    %v422 = vand.u32 2147483647, %v319
    %vm423 = vcmp.eq.f32.partialorder %v422, 8.507059e+37
    %v424 = vand.u32 %v319, 2147483648
    %v425 = vor.u32 1.1754944e-38, %v424
    %v426 = vsel %vm423, %v425, %v421
    %v427 = vmul.f32 %v296, %v426
    %v428 = vrcp.pop %v322
    %v429 = vmul.f32 %v322, %v428
    %v430 = vsub.f32 1.0, %v429
    %v431 = vmul.f32 %v428, %v430
    %v432 = vadd.f32 %v428, %v431
    %vm433 = vweird.f32 %v322
    %vm434 = vweird.f32 %v428
    %vm435 = vmor %vm433, %vm434
    %v436 = vsel %vm435, %v428, %v432
    %v437 = vand.u32 2147483647, %v322
    %vm438 = vcmp.eq.f32.partialorder %v437, 8.507059e+37
    %v439 = vand.u32 %v322, 2147483648
    %v440 = vor.u32 1.1754944e-38, %v439
    %v441 = vsel %vm438, %v440, %v436
    %v442 = vmul.f32 %v298, %v441
    %443 = vrot.lane.b32.xlu0 %v81, 64
    %v444 = vpop.permute.xlu0 %443
    %445 = vrot.lane.b32.xlu0 %v84, 64
    %v446 = vpop.permute.xlu0 %445
    %v450 = vsel %vm250, %v337, 0
    %v453 = vsel %vm250, %v352, 0
    %455 = vmatpush.msra.mxu0 0.0
    %456 = vmatpush.msra.mxu0 0.0
    %457 = vmatpush.msra.mxu0 0.0
    %458 = vmatpush.msra.mxu0 0.0
    %459 = vmatpush.msra.mxu0 0.0
    %460 = vmatpush.msra.mxu0 0.0
    %461 = vmatpush.msra.mxu0 0.0
    %462 = vmatpush.msra.mxu0 0.0
    %463 = vmatpush.msra.mxu0 0.0
    %464 = vmatpush.msra.mxu0 0.0
    %465 = vmatpush.msra.mxu0 0.0
    %466 = vmatpush.msra.mxu0 0.0
    %467 = vmatpush.msra.mxu0 0.0
    %468 = vmatpush.msra.mxu0 0.0
    %469 = vmatpush.msra.mxu0 %v446
    %470 = vmatpush.msra.mxu0 %v444
    %471 = vmatmul.f32.gmra.mxu0 %v450
    %v472 = vpop.f32.mrf.mxu0
    %v473 = vadd.f32 0.0, %v472
    %474 = vmatmul.f32.gmra.mxu0 %v453
    %v475 = vpop.f32.mrf.mxu0
    %v476 = vadd.f32 0.0, %v475
    %477 = vdwg.mxu0
    %478 = vrot.lane.b32.xlu0 %v81, 56
    %v479 = vpop.permute.xlu0 %478
    %480 = vrot.lane.b32.xlu0 %v84, 56
    %v481 = vpop.permute.xlu0 %480
    %v485 = vsel %vm250, %v367, 0
    %v488 = vsel %vm250, %v382, 0
    %490 = vmatpush.msra.mxu0 0.0
    %491 = vmatpush.msra.mxu0 0.0
    %492 = vmatpush.msra.mxu0 0.0
    %493 = vmatpush.msra.mxu0 0.0
    %494 = vmatpush.msra.mxu0 0.0
    %495 = vmatpush.msra.mxu0 0.0
    %496 = vmatpush.msra.mxu0 0.0
    %497 = vmatpush.msra.mxu0 0.0
    %498 = vmatpush.msra.mxu0 0.0
    %499 = vmatpush.msra.mxu0 0.0
    %500 = vmatpush.msra.mxu0 0.0
    %501 = vmatpush.msra.mxu0 0.0
    %502 = vmatpush.msra.mxu0 0.0
    %503 = vmatpush.msra.mxu0 0.0
    %504 = vmatpush.msra.mxu0 %v481
    %505 = vmatpush.msra.mxu0 %v479
    %506 = vmatmul.f32.gmra.mxu0 %v485
    %v507 = vpop.f32.mrf.mxu0
    %v508 = vadd.f32 0.0, %v507
    %509 = vmatmul.f32.gmra.mxu0 %v488
    %v510 = vpop.f32.mrf.mxu0
    %v511 = vadd.f32 0.0, %v510
    %512 = vdwg.mxu0
    %513 = vrot.lane.b32.xlu0 %v81, 48
    %v514 = vpop.permute.xlu0 %513
    %515 = vrot.lane.b32.xlu0 %v84, 48
    %v516 = vpop.permute.xlu0 %515
    %v520 = vsel %vm250, %v397, 0
    %v523 = vsel %vm250, %v412, 0
    %525 = vmatpush.msra.mxu0 0.0
    %526 = vmatpush.msra.mxu0 0.0
    %527 = vmatpush.msra.mxu0 0.0
    %528 = vmatpush.msra.mxu0 0.0
    %529 = vmatpush.msra.mxu0 0.0
    %530 = vmatpush.msra.mxu0 0.0
    %531 = vmatpush.msra.mxu0 0.0
    %532 = vmatpush.msra.mxu0 0.0
    %533 = vmatpush.msra.mxu0 0.0
    %534 = vmatpush.msra.mxu0 0.0
    %535 = vmatpush.msra.mxu0 0.0
    %536 = vmatpush.msra.mxu0 0.0
    %537 = vmatpush.msra.mxu0 0.0
    %538 = vmatpush.msra.mxu0 0.0
    %539 = vmatpush.msra.mxu0 %v516
    %540 = vmatpush.msra.mxu0 %v514
    %541 = vmatmul.f32.gmra.mxu0 %v520
    %v542 = vpop.f32.mrf.mxu0
    %v543 = vadd.f32 0.0, %v542
    %544 = vmatmul.f32.gmra.mxu0 %v523
    %v545 = vpop.f32.mrf.mxu0
    %v546 = vadd.f32 0.0, %v545
    %547 = vdwg.mxu0
    %548 = vrot.lane.b32.xlu0 %v81, 40
    %v549 = vpop.permute.xlu0 %548
    %550 = vrot.lane.b32.xlu0 %v84, 40
    %v551 = vpop.permute.xlu0 %550
    %v555 = vsel %vm250, %v427, 0
    %v558 = vsel %vm250, %v442, 0
    %560 = vmatpush.msra.mxu0 0.0
    %561 = vmatpush.msra.mxu0 0.0
    %562 = vmatpush.msra.mxu0 0.0
    %563 = vmatpush.msra.mxu0 0.0
    %564 = vmatpush.msra.mxu0 0.0
    %565 = vmatpush.msra.mxu0 0.0
    %566 = vmatpush.msra.mxu0 0.0
    %567 = vmatpush.msra.mxu0 0.0
    %568 = vmatpush.msra.mxu0 0.0
    %569 = vmatpush.msra.mxu0 0.0
    %570 = vmatpush.msra.mxu0 0.0
    %571 = vmatpush.msra.mxu0 0.0
    %572 = vmatpush.msra.mxu0 0.0
    %573 = vmatpush.msra.mxu0 0.0
    %574 = vmatpush.msra.mxu0 %v551
    %575 = vmatpush.msra.mxu0 %v549
    %576 = vmatmul.f32.gmra.mxu0 %v555
    %v577 = vpop.f32.mrf.mxu0
    %v578 = vadd.f32 0.0, %v577
    %579 = vmatmul.f32.gmra.mxu0 %v558
    %v580 = vpop.f32.mrf.mxu0
    %v581 = vadd.f32 0.0, %v580
    %582 = vdwg.mxu0
    %585 = vrot.lane.b32.xlu0 %v508, 8
    %v586 = vpop.permute.xlu0 %585
    %587 = vrot.lane.b32.xlu0 %v511, 8
    %v588 = vpop.permute.xlu0 %587
    %593 = vrot.lane.b32.xlu0 %v543, 16
    %v594 = vpop.permute.xlu0 %593
    %595 = vrot.lane.b32.xlu0 %v546, 16
    %v596 = vpop.permute.xlu0 %595
    %601 = vrot.lane.b32.xlu0 %v578, 24
    %v602 = vpop.permute.xlu0 %601
    %603 = vrot.lane.b32.xlu0 %v581, 24
    %v604 = vpop.permute.xlu0 %603
    %v607 = vsel %vm99, %v473, %v586
    %v608 = vsel %vm99, %v476, %v588
    %v609 = vsel %vm250, %v607, %v594
    %v610 = vsel %vm250, %v608, %v596
    %vm611 = vcmask 195584
    %v612 = vsel %vm611, %v609, %v602
    %v613 = vsel %vm611, %v610, %v604
    %v614 = vperm.slane %v92, 0
    %v616 = vsel %vm56, %v612, 0
    %v619 = vsel %vm56, %v613, 0
    %621 = vmatpush.msra.mxu0 0.0
    %622 = vmatpush.msra.mxu0 0.0
    %623 = vmatpush.msra.mxu0 0.0
    %624 = vmatpush.msra.mxu0 0.0
    %625 = vmatpush.msra.mxu0 0.0
    %626 = vmatpush.msra.mxu0 0.0
    %627 = vmatpush.msra.mxu0 0.0
    %628 = vmatpush.msra.mxu0 0.0
    %629 = vmatpush.msra.mxu0 0.0
    %630 = vmatpush.msra.mxu0 0.0
    %631 = vmatpush.msra.mxu0 0.0
    %632 = vmatpush.msra.mxu0 0.0
    %633 = vmatpush.msra.mxu0 %v91
    %634 = vmatpush.msra.mxu0 %v90
    %635 = vmatpush.msra.mxu0 %v89
    %636 = vmatpush.msra.mxu0 %v88
    %637 = vmatmul.f32.gmra.mxu0 %v616
    %v638 = vpop.f32.mrf.mxu0
    %v639 = vadd.f32 %v614, %v638
    %640 = vmatmul.f32.gmra.mxu0 %v619
    %v641 = vpop.f32.mrf.mxu0
    %v642 = vadd.f32 %v614, %v641
    %643 = vdwg.mxu0
    %v644 = vadd.f32 %v27, %v639
    %v645 = vadd.f32 %v28, %v642
    %v646 = vld [vmem:[%s5 + $0x4] sm:$0x1]
    %v647 = vld [vmem:[%s5 + $0x5] sm:$0x1]
    %v648 = vsel %vm56, %v644, 0.0
    %649 = vadd.xlane.f32.xlu0 %v648
    %v650 = vpop.xlane.xlu0 %649
    %v651 = vsel %vm56, %v645, 0.0
    %652 = vadd.xlane.f32.xlu0 %v651
    %v653 = vpop.xlane.xlu0 %652
    %v654 = vrcp.pop 32.0
    %v655 = vmul.f32 32.0, %v654
    %v656 = vsub.f32 1.0, %v655
    %v657 = vmul.f32 %v654, %v656
    %v658 = vadd.f32 %v654, %v657
    %vm659 = vweird.f32 %v654
    %v660 = vsel %vm659, %v654, %v658
    %v661 = vmul.f32 %v650, %v660
    %v662 = vmul.f32 %v653, %v660
    %v663 = vsub.f32 %v644, %v661
    %v664 = vsub.f32 %v645, %v662
    %v665 = vmul.f32 %v663, %v663
    %v666 = vmul.f32 %v664, %v664
    %v667 = vsel %vm56, %v665, 0.0
    %668 = vadd.xlane.f32.xlu0 %v667
    %v669 = vpop.xlane.xlu0 %668
    %v670 = vsel %vm56, %v666, 0.0
    %671 = vadd.xlane.f32.xlu0 %v670
    %v672 = vpop.xlane.xlu0 %671
    %v673 = vmul.f32 %v669, %v660
    %v674 = vmul.f32 %v672, %v660
    %v675 = vadd.f32 %v673, 1e-05
    %v676 = vadd.f32 %v674, 1e-05
    %v677 = vrsqrt.pop %v675
    %v678 = vmul.f32 %v677, %v675
    %v679 = vmul.f32 %v678, %v677
    %v680 = vmul.f32 0.5, %v679
    %v681 = vsub.f32 1.5, %v680
    %v682 = vmul.f32 %v677, %v681
    %vm683 = vweird.f32 %v675
    %vm684 = vweird.f32 %v677
    %vm685 = vmor %vm683, %vm684
    %v686 = vsel %vm685, %v677, %v682
    %v687 = vrsqrt.pop %v676
    %v688 = vmul.f32 %v687, %v676
    %v689 = vmul.f32 %v688, %v687
    %v690 = vmul.f32 0.5, %v689
    %v691 = vsub.f32 1.5, %v690
    %v692 = vmul.f32 %v687, %v691
    %vm693 = vweird.f32 %v676
    %vm694 = vweird.f32 %v687
    %vm695 = vmor %vm693, %vm694
    %v696 = vsel %vm695, %v687, %v692
    %v697 = vmul.f32 %v663, %v686
    %v698 = vmul.f32 %v664, %v696
    %v699 = vperm.slane %v646, 0
    %v700 = vmul.f32 %v697, %v699
    %v701 = vmul.f32 %v698, %v699
    %v702 = vperm.slane %v647, 0
    %v703 = vadd.f32 %v700, %v702
    %v704 = vadd.f32 %v701, %v702
    %s705 = scalar_lea.vmem %s3, 32
    %v706 = vld [vmem:[%s705] sm:$0xff]
    %v707 = vld [vmem:[%s705 + $0x8] sm:$0xff]
    %v708 = vld [vmem:[%s705 + $0x10] sm:$0xff]
    %v709 = vld [vmem:[%s705 + $0x18] sm:$0xff]
    %v710 = vld [vmem:[%s5 + $0x1] sm:$0x1]
    %v711 = vperm.slane %v710, 0
    %v713 = vsel %vm56, %v703, 0
    %v716 = vsel %vm56, %v704, 0
    %718 = vmatpush.msra.mxu0 0.0
    %719 = vmatpush.msra.mxu0 0.0
    %720 = vmatpush.msra.mxu0 0.0
    %721 = vmatpush.msra.mxu0 0.0
    %722 = vmatpush.msra.mxu0 0.0
    %723 = vmatpush.msra.mxu0 0.0
    %724 = vmatpush.msra.mxu0 0.0
    %725 = vmatpush.msra.mxu0 0.0
    %726 = vmatpush.msra.mxu0 0.0
    %727 = vmatpush.msra.mxu0 0.0
    %728 = vmatpush.msra.mxu0 0.0
    %729 = vmatpush.msra.mxu0 0.0
    %730 = vmatpush.msra.mxu0 %v709
    %731 = vmatpush.msra.mxu0 %v708
    %732 = vmatpush.msra.mxu0 %v707
    %733 = vmatpush.msra.mxu0 %v706
    %734 = vmatmul.f32.gmra.mxu0 %v713
    %v735 = vpop.f32.mrf.mxu0
    %v736 = vadd.f32 %v711, %v735
    %737 = vmatmul.f32.gmra.mxu0 %v716
    %v738 = vpop.f32.mrf.mxu0
    %v739 = vadd.f32 %v711, %v738
    %740 = vdwg.mxu0
    %v741 = vmul.f32 %v736, 0.35355338
    %v742 = vmul.f32 %v739, 0.35355338
    %747 = vrot.lane.b32.xlu0 %v706, 96
    %v748 = vpop.permute.xlu0 %747
    %749 = vrot.lane.b32.xlu0 %v707, 96
    %v750 = vpop.permute.xlu0 %749
    %751 = vrot.lane.b32.xlu0 %v708, 96
    %v752 = vpop.permute.xlu0 %751
    %753 = vrot.lane.b32.xlu0 %v709, 96
    %v754 = vpop.permute.xlu0 %753
    %760 = vrot.lane.b32.xlu0 %v711, 96
    %v761 = vpop.permute.xlu0 %760
    %v764 = vsel %vm56, %v29, 0
    %v767 = vsel %vm56, %v30, 0
    %v770 = vsel %vm56, %v31, 0
    %772 = vmatpush.msra.mxu0 0.0
    %773 = vmatpush.msra.mxu0 0.0
    %774 = vmatpush.msra.mxu0 0.0
    %775 = vmatpush.msra.mxu0 0.0
    %776 = vmatpush.msra.mxu0 0.0
    %777 = vmatpush.msra.mxu0 0.0
    %778 = vmatpush.msra.mxu0 0.0
    %779 = vmatpush.msra.mxu0 0.0
    %780 = vmatpush.msra.mxu0 0.0
    %781 = vmatpush.msra.mxu0 0.0
    %782 = vmatpush.msra.mxu0 0.0
    %783 = vmatpush.msra.mxu0 0.0
    %784 = vmatpush.msra.mxu0 %v754
    %785 = vmatpush.msra.mxu0 %v752
    %786 = vmatpush.msra.mxu0 %v750
    %787 = vmatpush.msra.mxu0 %v748
    %788 = vmatmul.f32.gmra.mxu0 %v764
    %v789 = vpop.f32.mrf.mxu0
    %v790 = vadd.f32 %v761, %v789
    %791 = vmatmul.f32.gmra.mxu0 %v767
    %v792 = vpop.f32.mrf.mxu0
    %v793 = vadd.f32 %v761, %v792
    %794 = vmatmul.f32.gmra.mxu0 %v770
    %v795 = vpop.f32.mrf.mxu0
    %v796 = vadd.f32 %v761, %v795
    %797 = vdwg.mxu0
    %v798 = vld [vmem:[%s4 + $0x20] sm:$0xff]
    %v799 = vld [vmem:[%s4 + $0x28] sm:$0xff]
    %v800 = vld [vmem:[%s4 + $0x30] sm:$0xff]
    %v801 = vld [vmem:[%s4 + $0x38] sm:$0xff]
    %804 = vrot.lane.b32.xlu0 %v48, 112
    %v805 = vpop.permute.xlu0 %804
    %806 = vrot.lane.b32.xlu0 %v49, 112
    %v807 = vpop.permute.xlu0 %806
    %v811 = vsel %vm99, %v741, 0
    %v814 = vsel %vm99, %v742, 0
    %v817 = vsel %vm99, %v790, 0
    %v820 = vsel %vm99, %v793, 0
    %v823 = vsel %vm99, %v796, 0
    %825 = vmatpush.xpose.msra.mxu0 0.0
    %826 = vmatpush.xpose.msra.mxu0 0.0
    %827 = vmatpush.xpose.msra.mxu0 0.0
    %828 = vmatpush.xpose.msra.mxu0 0.0
    %829 = vmatpush.xpose.msra.mxu0 0.0
    %830 = vmatpush.xpose.msra.mxu0 0.0
    %831 = vmatpush.xpose.msra.mxu0 0.0
    %832 = vmatpush.xpose.msra.mxu0 0.0
    %833 = vmatpush.xpose.msra.mxu0 0.0
    %834 = vmatpush.xpose.msra.mxu0 0.0
    %835 = vmatpush.xpose.msra.mxu0 0.0
    %836 = vmatpush.xpose.msra.mxu0 0.0
    %837 = vmatpush.xpose.msra.mxu0 0.0
    %838 = vmatpush.xpose.msra.mxu0 %v823
    %839 = vmatpush.xpose.msra.mxu0 %v820
    %840 = vmatpush.xpose.msra.mxu0 %v817
    %841 = vmatmul.f32.gmra.mxu0 %v811
    %v842 = vpop.f32.mrf.mxu0
    %v843 = vadd.f32 %v805, %v842
    %844 = vmatmul.f32.gmra.mxu0 %v814
    %v845 = vpop.f32.mrf.mxu0
    %v846 = vadd.f32 %v807, %v845
    %847 = vdwg.mxu0
    %848 = vrot.lane.b32.xlu0 %v741, 120
    %v849 = vpop.permute.xlu0 %848
    %850 = vrot.lane.b32.xlu0 %v742, 120
    %v851 = vpop.permute.xlu0 %850
    %852 = vrot.lane.b32.xlu0 %v790, 120
    %v853 = vpop.permute.xlu0 %852
    %854 = vrot.lane.b32.xlu0 %v793, 120
    %v855 = vpop.permute.xlu0 %854
    %856 = vrot.lane.b32.xlu0 %v796, 120
    %v857 = vpop.permute.xlu0 %856
    %v858 = vsel %vm99, %v849, 0
    %v860 = vsel %vm99, %v851, 0
    %v862 = vsel %vm99, %v853, 0
    %v864 = vsel %vm99, %v855, 0
    %v866 = vsel %vm99, %v857, 0
    %868 = vmatpush.xpose.msra.mxu0 0.0
    %869 = vmatpush.xpose.msra.mxu0 0.0
    %870 = vmatpush.xpose.msra.mxu0 0.0
    %871 = vmatpush.xpose.msra.mxu0 0.0
    %872 = vmatpush.xpose.msra.mxu0 0.0
    %873 = vmatpush.xpose.msra.mxu0 0.0
    %874 = vmatpush.xpose.msra.mxu0 0.0
    %875 = vmatpush.xpose.msra.mxu0 0.0
    %876 = vmatpush.xpose.msra.mxu0 0.0
    %877 = vmatpush.xpose.msra.mxu0 0.0
    %878 = vmatpush.xpose.msra.mxu0 0.0
    %879 = vmatpush.xpose.msra.mxu0 0.0
    %880 = vmatpush.xpose.msra.mxu0 0.0
    %881 = vmatpush.xpose.msra.mxu0 %v866
    %882 = vmatpush.xpose.msra.mxu0 %v864
    %883 = vmatpush.xpose.msra.mxu0 %v862
    %884 = vmatmul.f32.gmra.mxu0 %v858
    %v885 = vpop.f32.mrf.mxu0
    %v886 = vadd.f32 %v805, %v885
    %887 = vmatmul.f32.gmra.mxu0 %v860
    %v888 = vpop.f32.mrf.mxu0
    %v889 = vadd.f32 %v807, %v888
    %890 = vdwg.mxu0
    %891 = vrot.lane.b32.xlu0 %v741, 112
    %v892 = vpop.permute.xlu0 %891
    %893 = vrot.lane.b32.xlu0 %v742, 112
    %v894 = vpop.permute.xlu0 %893
    %895 = vrot.lane.b32.xlu0 %v790, 112
    %v896 = vpop.permute.xlu0 %895
    %897 = vrot.lane.b32.xlu0 %v793, 112
    %v898 = vpop.permute.xlu0 %897
    %899 = vrot.lane.b32.xlu0 %v796, 112
    %v900 = vpop.permute.xlu0 %899
    %v901 = vsel %vm99, %v892, 0
    %v903 = vsel %vm99, %v894, 0
    %v905 = vsel %vm99, %v896, 0
    %v907 = vsel %vm99, %v898, 0
    %v909 = vsel %vm99, %v900, 0
    %911 = vmatpush.xpose.msra.mxu0 0.0
    %912 = vmatpush.xpose.msra.mxu0 0.0
    %913 = vmatpush.xpose.msra.mxu0 0.0
    %914 = vmatpush.xpose.msra.mxu0 0.0
    %915 = vmatpush.xpose.msra.mxu0 0.0
    %916 = vmatpush.xpose.msra.mxu0 0.0
    %917 = vmatpush.xpose.msra.mxu0 0.0
    %918 = vmatpush.xpose.msra.mxu0 0.0
    %919 = vmatpush.xpose.msra.mxu0 0.0
    %920 = vmatpush.xpose.msra.mxu0 0.0
    %921 = vmatpush.xpose.msra.mxu0 0.0
    %922 = vmatpush.xpose.msra.mxu0 0.0
    %923 = vmatpush.xpose.msra.mxu0 0.0
    %924 = vmatpush.xpose.msra.mxu0 %v909
    %925 = vmatpush.xpose.msra.mxu0 %v907
    %926 = vmatpush.xpose.msra.mxu0 %v905
    %927 = vmatmul.f32.gmra.mxu0 %v901
    %v928 = vpop.f32.mrf.mxu0
    %v929 = vadd.f32 %v805, %v928
    %930 = vmatmul.f32.gmra.mxu0 %v903
    %v931 = vpop.f32.mrf.mxu0
    %v932 = vadd.f32 %v807, %v931
    %933 = vdwg.mxu0
    %934 = vrot.lane.b32.xlu0 %v741, 104
    %v935 = vpop.permute.xlu0 %934
    %936 = vrot.lane.b32.xlu0 %v742, 104
    %v937 = vpop.permute.xlu0 %936
    %938 = vrot.lane.b32.xlu0 %v790, 104
    %v939 = vpop.permute.xlu0 %938
    %940 = vrot.lane.b32.xlu0 %v793, 104
    %v941 = vpop.permute.xlu0 %940
    %942 = vrot.lane.b32.xlu0 %v796, 104
    %v943 = vpop.permute.xlu0 %942
    %v944 = vsel %vm99, %v935, 0
    %v946 = vsel %vm99, %v937, 0
    %v948 = vsel %vm99, %v939, 0
    %v950 = vsel %vm99, %v941, 0
    %v952 = vsel %vm99, %v943, 0
    %954 = vmatpush.xpose.msra.mxu0 0.0
    %955 = vmatpush.xpose.msra.mxu0 0.0
    %956 = vmatpush.xpose.msra.mxu0 0.0
    %957 = vmatpush.xpose.msra.mxu0 0.0
    %958 = vmatpush.xpose.msra.mxu0 0.0
    %959 = vmatpush.xpose.msra.mxu0 0.0
    %960 = vmatpush.xpose.msra.mxu0 0.0
    %961 = vmatpush.xpose.msra.mxu0 0.0
    %962 = vmatpush.xpose.msra.mxu0 0.0
    %963 = vmatpush.xpose.msra.mxu0 0.0
    %964 = vmatpush.xpose.msra.mxu0 0.0
    %965 = vmatpush.xpose.msra.mxu0 0.0
    %966 = vmatpush.xpose.msra.mxu0 0.0
    %967 = vmatpush.xpose.msra.mxu0 %v952
    %968 = vmatpush.xpose.msra.mxu0 %v950
    %969 = vmatpush.xpose.msra.mxu0 %v948
    %970 = vmatmul.f32.gmra.mxu0 %v944
    %v971 = vpop.f32.mrf.mxu0
    %v972 = vadd.f32 %v805, %v971
    %973 = vmatmul.f32.gmra.mxu0 %v946
    %v974 = vpop.f32.mrf.mxu0
    %v975 = vadd.f32 %v807, %v974
    %976 = vdwg.mxu0
    %v977 = vsel %vm611, %v843, -inf
    %978 = vmax.xlane.f32.xlu0 %v977
    %v979 = vpop.xlane.xlu0 %978
    %v980 = vsel %vm611, %v846, -inf
    %981 = vmax.xlane.f32.xlu0 %v980
    %v982 = vpop.xlane.xlu0 %981
    %v983 = vsel %vm611, %v886, -inf
    %984 = vmax.xlane.f32.xlu0 %v983
    %v985 = vpop.xlane.xlu0 %984
    %v986 = vsel %vm611, %v889, -inf
    %987 = vmax.xlane.f32.xlu0 %v986
    %v988 = vpop.xlane.xlu0 %987
    %v989 = vsel %vm611, %v929, -inf
    %990 = vmax.xlane.f32.xlu0 %v989
    %v991 = vpop.xlane.xlu0 %990
    %v992 = vsel %vm611, %v932, -inf
    %993 = vmax.xlane.f32.xlu0 %v992
    %v994 = vpop.xlane.xlu0 %993
    %v995 = vsel %vm611, %v972, -inf
    %996 = vmax.xlane.f32.xlu0 %v995
    %v997 = vpop.xlane.xlu0 %996
    %v998 = vsel %vm611, %v975, -inf
    %999 = vmax.xlane.f32.xlu0 %v998
    %v1000 = vpop.xlane.xlu0 %999
    %v1001 = vsub.f32 %v843, %v979
    %v1002 = vsub.f32 %v846, %v982
    %v1003 = vsub.f32 %v886, %v985
    %v1004 = vsub.f32 %v889, %v988
    %v1005 = vsub.f32 %v929, %v991
    %v1006 = vsub.f32 %v932, %v994
    %v1007 = vsub.f32 %v972, %v997
    %v1008 = vsub.f32 %v975, %v1000
    %v1009 = vmul.f32 %v1001, 1.442695
    %v1010 = vpow.pop %v1009
    %v1011 = vmul.f32 %v1002, 1.442695
    %v1012 = vpow.pop %v1011
    %v1013 = vmul.f32 %v1003, 1.442695
    %v1014 = vpow.pop %v1013
    %v1015 = vmul.f32 %v1004, 1.442695
    %v1016 = vpow.pop %v1015
    %v1017 = vmul.f32 %v1005, 1.442695
    %v1018 = vpow.pop %v1017
    %v1019 = vmul.f32 %v1006, 1.442695
    %v1020 = vpow.pop %v1019
    %v1021 = vmul.f32 %v1007, 1.442695
    %v1022 = vpow.pop %v1021
    %v1023 = vmul.f32 %v1008, 1.442695
    %v1024 = vpow.pop %v1023
    %v1025 = vsel %vm611, %v1010, 0.0
    %1026 = vadd.xlane.f32.xlu0 %v1025
    %v1027 = vpop.xlane.xlu0 %1026
    %v1028 = vsel %vm611, %v1012, 0.0
    %1029 = vadd.xlane.f32.xlu0 %v1028
    %v1030 = vpop.xlane.xlu0 %1029
    %v1031 = vsel %vm611, %v1014, 0.0
    %1032 = vadd.xlane.f32.xlu0 %v1031
    %v1033 = vpop.xlane.xlu0 %1032
    %v1034 = vsel %vm611, %v1016, 0.0
    %1035 = vadd.xlane.f32.xlu0 %v1034
    %v1036 = vpop.xlane.xlu0 %1035
    %v1037 = vsel %vm611, %v1018, 0.0
    %1038 = vadd.xlane.f32.xlu0 %v1037
    %v1039 = vpop.xlane.xlu0 %1038
    %v1040 = vsel %vm611, %v1020, 0.0
    %1041 = vadd.xlane.f32.xlu0 %v1040
    %v1042 = vpop.xlane.xlu0 %1041
    %v1043 = vsel %vm611, %v1022, 0.0
    %1044 = vadd.xlane.f32.xlu0 %v1043
    %v1045 = vpop.xlane.xlu0 %1044
    %v1046 = vsel %vm611, %v1024, 0.0
    %1047 = vadd.xlane.f32.xlu0 %v1046
    %v1048 = vpop.xlane.xlu0 %1047
    %v1049 = vrcp.pop %v1027
    %v1050 = vmul.f32 %v1027, %v1049
    %v1051 = vsub.f32 1.0, %v1050
    %v1052 = vmul.f32 %v1049, %v1051
    %v1053 = vadd.f32 %v1049, %v1052
    %vm1054 = vweird.f32 %v1027
    %vm1055 = vweird.f32 %v1049
    %vm1056 = vmor %vm1054, %vm1055
    %v1057 = vsel %vm1056, %v1049, %v1053
    %v1058 = vand.u32 2147483647, %v1027
    %vm1059 = vcmp.eq.f32.partialorder %v1058, 8.507059e+37
    %v1060 = vand.u32 %v1027, 2147483648
    %v1061 = vor.u32 1.1754944e-38, %v1060
    %v1062 = vsel %vm1059, %v1061, %v1057
    %v1063 = vmul.f32 %v1010, %v1062
    %v1064 = vrcp.pop %v1030
    %v1065 = vmul.f32 %v1030, %v1064
    %v1066 = vsub.f32 1.0, %v1065
    %v1067 = vmul.f32 %v1064, %v1066
    %v1068 = vadd.f32 %v1064, %v1067
    %vm1069 = vweird.f32 %v1030
    %vm1070 = vweird.f32 %v1064
    %vm1071 = vmor %vm1069, %vm1070
    %v1072 = vsel %vm1071, %v1064, %v1068
    %v1073 = vand.u32 2147483647, %v1030
    %vm1074 = vcmp.eq.f32.partialorder %v1073, 8.507059e+37
    %v1075 = vand.u32 %v1030, 2147483648
    %v1076 = vor.u32 1.1754944e-38, %v1075
    %v1077 = vsel %vm1074, %v1076, %v1072
    %v1078 = vmul.f32 %v1012, %v1077
    %v1079 = vrcp.pop %v1033
    %v1080 = vmul.f32 %v1033, %v1079
    %v1081 = vsub.f32 1.0, %v1080
    %v1082 = vmul.f32 %v1079, %v1081
    %v1083 = vadd.f32 %v1079, %v1082
    %vm1084 = vweird.f32 %v1033
    %vm1085 = vweird.f32 %v1079
    %vm1086 = vmor %vm1084, %vm1085
    %v1087 = vsel %vm1086, %v1079, %v1083
    %v1088 = vand.u32 2147483647, %v1033
    %vm1089 = vcmp.eq.f32.partialorder %v1088, 8.507059e+37
    %v1090 = vand.u32 %v1033, 2147483648
    %v1091 = vor.u32 1.1754944e-38, %v1090
    %v1092 = vsel %vm1089, %v1091, %v1087
    %v1093 = vmul.f32 %v1014, %v1092
    %v1094 = vrcp.pop %v1036
    %v1095 = vmul.f32 %v1036, %v1094
    %v1096 = vsub.f32 1.0, %v1095
    %v1097 = vmul.f32 %v1094, %v1096
    %v1098 = vadd.f32 %v1094, %v1097
    %vm1099 = vweird.f32 %v1036
    %vm1100 = vweird.f32 %v1094
    %vm1101 = vmor %vm1099, %vm1100
    %v1102 = vsel %vm1101, %v1094, %v1098
    %v1103 = vand.u32 2147483647, %v1036
    %vm1104 = vcmp.eq.f32.partialorder %v1103, 8.507059e+37
    %v1105 = vand.u32 %v1036, 2147483648
    %v1106 = vor.u32 1.1754944e-38, %v1105
    %v1107 = vsel %vm1104, %v1106, %v1102
    %v1108 = vmul.f32 %v1016, %v1107
    %v1109 = vrcp.pop %v1039
    %v1110 = vmul.f32 %v1039, %v1109
    %v1111 = vsub.f32 1.0, %v1110
    %v1112 = vmul.f32 %v1109, %v1111
    %v1113 = vadd.f32 %v1109, %v1112
    %vm1114 = vweird.f32 %v1039
    %vm1115 = vweird.f32 %v1109
    %vm1116 = vmor %vm1114, %vm1115
    %v1117 = vsel %vm1116, %v1109, %v1113
    %v1118 = vand.u32 2147483647, %v1039
    %vm1119 = vcmp.eq.f32.partialorder %v1118, 8.507059e+37
    %v1120 = vand.u32 %v1039, 2147483648
    %v1121 = vor.u32 1.1754944e-38, %v1120
    %v1122 = vsel %vm1119, %v1121, %v1117
    %v1123 = vmul.f32 %v1018, %v1122
    %v1124 = vrcp.pop %v1042
    %v1125 = vmul.f32 %v1042, %v1124
    %v1126 = vsub.f32 1.0, %v1125
    %v1127 = vmul.f32 %v1124, %v1126
    %v1128 = vadd.f32 %v1124, %v1127
    %vm1129 = vweird.f32 %v1042
    %vm1130 = vweird.f32 %v1124
    %vm1131 = vmor %vm1129, %vm1130
    %v1132 = vsel %vm1131, %v1124, %v1128
    %v1133 = vand.u32 2147483647, %v1042
    %vm1134 = vcmp.eq.f32.partialorder %v1133, 8.507059e+37
    %v1135 = vand.u32 %v1042, 2147483648
    %v1136 = vor.u32 1.1754944e-38, %v1135
    %v1137 = vsel %vm1134, %v1136, %v1132
    %v1138 = vmul.f32 %v1020, %v1137
    %v1139 = vrcp.pop %v1045
    %v1140 = vmul.f32 %v1045, %v1139
    %v1141 = vsub.f32 1.0, %v1140
    %v1142 = vmul.f32 %v1139, %v1141
    %v1143 = vadd.f32 %v1139, %v1142
    %vm1144 = vweird.f32 %v1045
    %vm1145 = vweird.f32 %v1139
    %vm1146 = vmor %vm1144, %vm1145
    %v1147 = vsel %vm1146, %v1139, %v1143
    %v1148 = vand.u32 2147483647, %v1045
    %vm1149 = vcmp.eq.f32.partialorder %v1148, 8.507059e+37
    %v1150 = vand.u32 %v1045, 2147483648
    %v1151 = vor.u32 1.1754944e-38, %v1150
    %v1152 = vsel %vm1149, %v1151, %v1147
    %v1153 = vmul.f32 %v1022, %v1152
    %v1154 = vrcp.pop %v1048
    %v1155 = vmul.f32 %v1048, %v1154
    %v1156 = vsub.f32 1.0, %v1155
    %v1157 = vmul.f32 %v1154, %v1156
    %v1158 = vadd.f32 %v1154, %v1157
    %vm1159 = vweird.f32 %v1048
    %vm1160 = vweird.f32 %v1154
    %vm1161 = vmor %vm1159, %vm1160
    %v1162 = vsel %vm1161, %v1154, %v1158
    %v1163 = vand.u32 2147483647, %v1048
    %vm1164 = vcmp.eq.f32.partialorder %v1163, 8.507059e+37
    %v1165 = vand.u32 %v1048, 2147483648
    %v1166 = vor.u32 1.1754944e-38, %v1165
    %v1167 = vsel %vm1164, %v1166, %v1162
    %v1168 = vmul.f32 %v1024, %v1167
    %1169 = vrot.lane.b32.xlu0 %v790, 96
    %v1170 = vpop.permute.xlu0 %1169
    %1171 = vrot.lane.b32.xlu0 %v793, 96
    %v1172 = vpop.permute.xlu0 %1171
    %1173 = vrot.lane.b32.xlu0 %v796, 96
    %v1174 = vpop.permute.xlu0 %1173
    %v1179 = vsel %vm611, %v1063, 0
    %v1182 = vsel %vm611, %v1078, 0
    %1184 = vmatpush.msra.mxu0 0.0
    %1185 = vmatpush.msra.mxu0 0.0
    %1186 = vmatpush.msra.mxu0 0.0
    %1187 = vmatpush.msra.mxu0 0.0
    %1188 = vmatpush.msra.mxu0 0.0
    %1189 = vmatpush.msra.mxu0 0.0
    %1190 = vmatpush.msra.mxu0 0.0
    %1191 = vmatpush.msra.mxu0 0.0
    %1192 = vmatpush.msra.mxu0 0.0
    %1193 = vmatpush.msra.mxu0 0.0
    %1194 = vmatpush.msra.mxu0 0.0
    %1195 = vmatpush.msra.mxu0 0.0
    %1196 = vmatpush.msra.mxu0 0.0
    %1197 = vmatpush.msra.mxu0 %v1174
    %1198 = vmatpush.msra.mxu0 %v1172
    %1199 = vmatpush.msra.mxu0 %v1170
    %1200 = vmatmul.f32.gmra.mxu0 %v1179
    %v1201 = vpop.f32.mrf.mxu0
    %v1202 = vadd.f32 0.0, %v1201
    %1203 = vmatmul.f32.gmra.mxu0 %v1182
    %v1204 = vpop.f32.mrf.mxu0
    %v1205 = vadd.f32 0.0, %v1204
    %1206 = vdwg.mxu0
    %1207 = vrot.lane.b32.xlu0 %v790, 88
    %v1208 = vpop.permute.xlu0 %1207
    %1209 = vrot.lane.b32.xlu0 %v793, 88
    %v1210 = vpop.permute.xlu0 %1209
    %1211 = vrot.lane.b32.xlu0 %v796, 88
    %v1212 = vpop.permute.xlu0 %1211
    %v1217 = vsel %vm611, %v1093, 0
    %v1220 = vsel %vm611, %v1108, 0
    %1222 = vmatpush.msra.mxu0 0.0
    %1223 = vmatpush.msra.mxu0 0.0
    %1224 = vmatpush.msra.mxu0 0.0
    %1225 = vmatpush.msra.mxu0 0.0
    %1226 = vmatpush.msra.mxu0 0.0
    %1227 = vmatpush.msra.mxu0 0.0
    %1228 = vmatpush.msra.mxu0 0.0
    %1229 = vmatpush.msra.mxu0 0.0
    %1230 = vmatpush.msra.mxu0 0.0
    %1231 = vmatpush.msra.mxu0 0.0
    %1232 = vmatpush.msra.mxu0 0.0
    %1233 = vmatpush.msra.mxu0 0.0
    %1234 = vmatpush.msra.mxu0 0.0
    %1235 = vmatpush.msra.mxu0 %v1212
    %1236 = vmatpush.msra.mxu0 %v1210
    %1237 = vmatpush.msra.mxu0 %v1208
    %1238 = vmatmul.f32.gmra.mxu0 %v1217
    %v1239 = vpop.f32.mrf.mxu0
    %v1240 = vadd.f32 0.0, %v1239
    %1241 = vmatmul.f32.gmra.mxu0 %v1220
    %v1242 = vpop.f32.mrf.mxu0
    %v1243 = vadd.f32 0.0, %v1242
    %1244 = vdwg.mxu0
    %1245 = vrot.lane.b32.xlu0 %v790, 80
    %v1246 = vpop.permute.xlu0 %1245
    %1247 = vrot.lane.b32.xlu0 %v793, 80
    %v1248 = vpop.permute.xlu0 %1247
    %1249 = vrot.lane.b32.xlu0 %v796, 80
    %v1250 = vpop.permute.xlu0 %1249
    %v1255 = vsel %vm611, %v1123, 0
    %v1258 = vsel %vm611, %v1138, 0
    %1260 = vmatpush.msra.mxu0 0.0
    %1261 = vmatpush.msra.mxu0 0.0
    %1262 = vmatpush.msra.mxu0 0.0
    %1263 = vmatpush.msra.mxu0 0.0
    %1264 = vmatpush.msra.mxu0 0.0
    %1265 = vmatpush.msra.mxu0 0.0
    %1266 = vmatpush.msra.mxu0 0.0
    %1267 = vmatpush.msra.mxu0 0.0
    %1268 = vmatpush.msra.mxu0 0.0
    %1269 = vmatpush.msra.mxu0 0.0
    %1270 = vmatpush.msra.mxu0 0.0
    %1271 = vmatpush.msra.mxu0 0.0
    %1272 = vmatpush.msra.mxu0 0.0
    %1273 = vmatpush.msra.mxu0 %v1250
    %1274 = vmatpush.msra.mxu0 %v1248
    %1275 = vmatpush.msra.mxu0 %v1246
    %1276 = vmatmul.f32.gmra.mxu0 %v1255
    %v1277 = vpop.f32.mrf.mxu0
    %v1278 = vadd.f32 0.0, %v1277
    %1279 = vmatmul.f32.gmra.mxu0 %v1258
    %v1280 = vpop.f32.mrf.mxu0
    %v1281 = vadd.f32 0.0, %v1280
    %1282 = vdwg.mxu0
    %1283 = vrot.lane.b32.xlu0 %v790, 72
    %v1284 = vpop.permute.xlu0 %1283
    %1285 = vrot.lane.b32.xlu0 %v793, 72
    %v1286 = vpop.permute.xlu0 %1285
    %1287 = vrot.lane.b32.xlu0 %v796, 72
    %v1288 = vpop.permute.xlu0 %1287
    %v1293 = vsel %vm611, %v1153, 0
    %v1296 = vsel %vm611, %v1168, 0
    %1298 = vmatpush.msra.mxu0 0.0
    %1299 = vmatpush.msra.mxu0 0.0
    %1300 = vmatpush.msra.mxu0 0.0
    %1301 = vmatpush.msra.mxu0 0.0
    %1302 = vmatpush.msra.mxu0 0.0
    %1303 = vmatpush.msra.mxu0 0.0
    %1304 = vmatpush.msra.mxu0 0.0
    %1305 = vmatpush.msra.mxu0 0.0
    %1306 = vmatpush.msra.mxu0 0.0
    %1307 = vmatpush.msra.mxu0 0.0
    %1308 = vmatpush.msra.mxu0 0.0
    %1309 = vmatpush.msra.mxu0 0.0
    %1310 = vmatpush.msra.mxu0 0.0
    %1311 = vmatpush.msra.mxu0 %v1288
    %1312 = vmatpush.msra.mxu0 %v1286
    %1313 = vmatpush.msra.mxu0 %v1284
    %1314 = vmatmul.f32.gmra.mxu0 %v1293
    %v1315 = vpop.f32.mrf.mxu0
    %v1316 = vadd.f32 0.0, %v1315
    %1317 = vmatmul.f32.gmra.mxu0 %v1296
    %v1318 = vpop.f32.mrf.mxu0
    %v1319 = vadd.f32 0.0, %v1318
    %1320 = vdwg.mxu0
    %1323 = vrot.lane.b32.xlu0 %v1240, 8
    %v1324 = vpop.permute.xlu0 %1323
    %1325 = vrot.lane.b32.xlu0 %v1243, 8
    %v1326 = vpop.permute.xlu0 %1325
    %1331 = vrot.lane.b32.xlu0 %v1278, 16
    %v1332 = vpop.permute.xlu0 %1331
    %1333 = vrot.lane.b32.xlu0 %v1281, 16
    %v1334 = vpop.permute.xlu0 %1333
    %1339 = vrot.lane.b32.xlu0 %v1316, 24
    %v1340 = vpop.permute.xlu0 %1339
    %1341 = vrot.lane.b32.xlu0 %v1319, 24
    %v1342 = vpop.permute.xlu0 %1341
    %v1345 = vsel %vm99, %v1202, %v1324
    %v1346 = vsel %vm99, %v1205, %v1326
    %v1347 = vsel %vm250, %v1345, %v1332
    %v1348 = vsel %vm250, %v1346, %v1334
    %v1349 = vsel %vm611, %v1347, %v1340
    %v1350 = vsel %vm611, %v1348, %v1342
    %1352 = vrot.lane.b32.xlu0 %v614, 96
    %v1353 = vpop.permute.xlu0 %1352
    %v1356 = vsel %vm56, %v1349, 0
    %v1359 = vsel %vm56, %v1350, 0
    %1361 = vmatpush.msra.mxu0 0.0
    %1362 = vmatpush.msra.mxu0 0.0
    %1363 = vmatpush.msra.mxu0 0.0
    %1364 = vmatpush.msra.mxu0 0.0
    %1365 = vmatpush.msra.mxu0 0.0
    %1366 = vmatpush.msra.mxu0 0.0
    %1367 = vmatpush.msra.mxu0 0.0
    %1368 = vmatpush.msra.mxu0 0.0
    %1369 = vmatpush.msra.mxu0 0.0
    %1370 = vmatpush.msra.mxu0 0.0
    %1371 = vmatpush.msra.mxu0 0.0
    %1372 = vmatpush.msra.mxu0 0.0
    %1373 = vmatpush.msra.mxu0 %v801
    %1374 = vmatpush.msra.mxu0 %v800
    %1375 = vmatpush.msra.mxu0 %v799
    %1376 = vmatpush.msra.mxu0 %v798
    %1377 = vmatmul.f32.gmra.mxu0 %v1356
    %v1378 = vpop.f32.mrf.mxu0
    %v1379 = vadd.f32 %v1353, %v1378
    %1380 = vmatmul.f32.gmra.mxu0 %v1359
    %v1381 = vpop.f32.mrf.mxu0
    %v1382 = vadd.f32 %v1353, %v1381
    %1383 = vdwg.mxu0
    %v1384 = vadd.f32 %v703, %v1379
    %v1385 = vadd.f32 %v704, %v1382
    %v1386 = vsel %vm56, %v1384, 0.0
    %1387 = vadd.xlane.f32.xlu0 %v1386
    %v1388 = vpop.xlane.xlu0 %1387
    %v1389 = vsel %vm56, %v1385, 0.0
    %1390 = vadd.xlane.f32.xlu0 %v1389
    %v1391 = vpop.xlane.xlu0 %1390
    %v1392 = vmul.f32 %v1388, %v660
    %v1393 = vmul.f32 %v1391, %v660
    %v1394 = vsub.f32 %v1384, %v1392
    %v1395 = vsub.f32 %v1385, %v1393
    %v1396 = vmul.f32 %v1394, %v1394
    %v1397 = vmul.f32 %v1395, %v1395
    %v1398 = vsel %vm56, %v1396, 0.0
    %1399 = vadd.xlane.f32.xlu0 %v1398
    %v1400 = vpop.xlane.xlu0 %1399
    %v1401 = vsel %vm56, %v1397, 0.0
    %1402 = vadd.xlane.f32.xlu0 %v1401
    %v1403 = vpop.xlane.xlu0 %1402
    %v1404 = vmul.f32 %v1400, %v660
    %v1405 = vmul.f32 %v1403, %v660
    %v1406 = vadd.f32 %v1404, 1e-05
    %v1407 = vadd.f32 %v1405, 1e-05
    %v1408 = vrsqrt.pop %v1406
    %v1409 = vmul.f32 %v1408, %v1406
    %v1410 = vmul.f32 %v1409, %v1408
    %v1411 = vmul.f32 0.5, %v1410
    %v1412 = vsub.f32 1.5, %v1411
    %v1413 = vmul.f32 %v1408, %v1412
    %vm1414 = vweird.f32 %v1406
    %vm1415 = vweird.f32 %v1408
    %vm1416 = vmor %vm1414, %vm1415
    %v1417 = vsel %vm1416, %v1408, %v1413
    %v1418 = vrsqrt.pop %v1407
    %v1419 = vmul.f32 %v1418, %v1407
    %v1420 = vmul.f32 %v1419, %v1418
    %v1421 = vmul.f32 0.5, %v1420
    %v1422 = vsub.f32 1.5, %v1421
    %v1423 = vmul.f32 %v1418, %v1422
    %vm1424 = vweird.f32 %v1407
    %vm1425 = vweird.f32 %v1418
    %vm1426 = vmor %vm1424, %vm1425
    %v1427 = vsel %vm1426, %v1418, %v1423
    %v1428 = vmul.f32 %v1394, %v1417
    %v1429 = vmul.f32 %v1395, %v1427
    %1431 = vrot.lane.b32.xlu0 %v699, 96
    %v1432 = vpop.permute.xlu0 %1431
    %v1434 = vmul.f32 %v1428, %v1432
    %v1435 = vmul.f32 %v1429, %v1432
    %1437 = vrot.lane.b32.xlu0 %v702, 96
    %v1438 = vpop.permute.xlu0 %1437
    %v1440 = vadd.f32 %v1434, %v1438
    %v1441 = vadd.f32 %v1435, %v1438
    %s1442 = scalar_lea.vmem %s3, 64
    %v1443 = vld [vmem:[%s1442] sm:$0xff]
    %v1444 = vld [vmem:[%s1442 + $0x8] sm:$0xff]
    %v1445 = vld [vmem:[%s1442 + $0x10] sm:$0xff]
    %v1446 = vld [vmem:[%s1442 + $0x18] sm:$0xff]
    %v1447 = vld [vmem:[%s5 + $0x3] sm:$0x1]
    %v1448 = vperm.slane %v1447, 0
    %v1450 = vsel %vm56, %v1440, 0
    %v1453 = vsel %vm56, %v1441, 0
    %1455 = vmatpush.msra.mxu0 0.0
    %1456 = vmatpush.msra.mxu0 0.0
    %1457 = vmatpush.msra.mxu0 0.0
    %1458 = vmatpush.msra.mxu0 0.0
    %1459 = vmatpush.msra.mxu0 0.0
    %1460 = vmatpush.msra.mxu0 0.0
    %1461 = vmatpush.msra.mxu0 0.0
    %1462 = vmatpush.msra.mxu0 0.0
    %1463 = vmatpush.msra.mxu0 0.0
    %1464 = vmatpush.msra.mxu0 0.0
    %1465 = vmatpush.msra.mxu0 0.0
    %1466 = vmatpush.msra.mxu0 0.0
    %1467 = vmatpush.msra.mxu0 %v1446
    %1468 = vmatpush.msra.mxu0 %v1445
    %1469 = vmatpush.msra.mxu0 %v1444
    %1470 = vmatpush.msra.mxu0 %v1443
    %1471 = vmatmul.f32.gmra.mxu0 %v1450
    %v1472 = vpop.f32.mrf.mxu0
    %v1473 = vadd.f32 %v1448, %v1472
    %1474 = vmatmul.f32.gmra.mxu0 %v1453
    %v1475 = vpop.f32.mrf.mxu0
    %v1476 = vadd.f32 %v1448, %v1475
    %1477 = vdwg.mxu0
    %v1478 = vmax.f32 %v1473, 0.0
    %v1479 = vmax.f32 %v1476, 0.0
    %v1480 = vld [vmem:[%s4 + $0x40] sm:$0xff]
    %v1481 = vld [vmem:[%s4 + $0x48] sm:$0xff]
    %v1482 = vld [vmem:[%s4 + $0x50] sm:$0xff]
    %v1483 = vld [vmem:[%s4 + $0x58] sm:$0xff]
    %v1484 = vld [vmem:[%s4 + $0x60] sm:$0xff]
    %v1485 = vld [vmem:[%s4 + $0x68] sm:$0xff]
    %v1486 = vld [vmem:[%s4 + $0x70] sm:$0xff]
    %v1487 = vld [vmem:[%s4 + $0x78] sm:$0xff]
    %1488 = vrot.lane.b32.xlu0 %v614, 64
    %v1489 = vpop.permute.xlu0 %1488
    %vm1491 = vcmask 523264
    %v1493 = vsel %vm1491, %v1478, 0
    %v1496 = vsel %vm1491, %v1479, 0
    %1498 = vmatpush.msra.mxu0 0.0
    %1499 = vmatpush.msra.mxu0 0.0
    %1500 = vmatpush.msra.mxu0 0.0
    %1501 = vmatpush.msra.mxu0 0.0
    %1502 = vmatpush.msra.mxu0 0.0
    %1503 = vmatpush.msra.mxu0 0.0
    %1504 = vmatpush.msra.mxu0 0.0
    %1505 = vmatpush.msra.mxu0 0.0
    %1506 = vmatpush.msra.mxu0 %v1487
    %1507 = vmatpush.msra.mxu0 %v1486
    %1508 = vmatpush.msra.mxu0 %v1485
    %1509 = vmatpush.msra.mxu0 %v1484
    %1510 = vmatpush.msra.mxu0 %v1483
    %1511 = vmatpush.msra.mxu0 %v1482
    %1512 = vmatpush.msra.mxu0 %v1481
    %1513 = vmatpush.msra.mxu0 %v1480
    %1514 = vmatmul.f32.gmra.mxu0 %v1493
    %v1515 = vpop.f32.mrf.mxu0
    %v1516 = vadd.f32 %v1489, %v1515
    %1517 = vmatmul.f32.gmra.mxu0 %v1496
    %v1518 = vpop.f32.mrf.mxu0
    %v1519 = vadd.f32 %v1489, %v1518
    %1520 = vdwg.mxu0
    %v1521 = vadd.f32 %v1440, %v1516
    %v1522 = vadd.f32 %v1441, %v1519
    %v1523 = vsel %vm56, %v1521, 0.0
    %1524 = vadd.xlane.f32.xlu0 %v1523
    %v1525 = vpop.xlane.xlu0 %1524
    %v1526 = vsel %vm56, %v1522, 0.0
    %1527 = vadd.xlane.f32.xlu0 %v1526
    %v1528 = vpop.xlane.xlu0 %1527
    %v1529 = vmul.f32 %v1525, %v660
    %v1530 = vmul.f32 %v1528, %v660
    %v1531 = vsub.f32 %v1521, %v1529
    %v1532 = vsub.f32 %v1522, %v1530
    %v1533 = vmul.f32 %v1531, %v1531
    %v1534 = vmul.f32 %v1532, %v1532
    %v1535 = vsel %vm56, %v1533, 0.0
    %1536 = vadd.xlane.f32.xlu0 %v1535
    %v1537 = vpop.xlane.xlu0 %1536
    %v1538 = vsel %vm56, %v1534, 0.0
    %1539 = vadd.xlane.f32.xlu0 %v1538
    %v1540 = vpop.xlane.xlu0 %1539
    %v1541 = vmul.f32 %v1537, %v660
    %v1542 = vmul.f32 %v1540, %v660
    %v1543 = vadd.f32 %v1541, 1e-05
    %v1544 = vadd.f32 %v1542, 1e-05
    %v1545 = vrsqrt.pop %v1543
    %v1546 = vmul.f32 %v1545, %v1543
    %v1547 = vmul.f32 %v1546, %v1545
    %v1548 = vmul.f32 0.5, %v1547
    %v1549 = vsub.f32 1.5, %v1548
    %v1550 = vmul.f32 %v1545, %v1549
    %vm1551 = vweird.f32 %v1543
    %vm1552 = vweird.f32 %v1545
    %vm1553 = vmor %vm1551, %vm1552
    %v1554 = vsel %vm1553, %v1545, %v1550
    %v1555 = vrsqrt.pop %v1544
    %v1556 = vmul.f32 %v1555, %v1544
    %v1557 = vmul.f32 %v1556, %v1555
    %v1558 = vmul.f32 0.5, %v1557
    %v1559 = vsub.f32 1.5, %v1558
    %v1560 = vmul.f32 %v1555, %v1559
    %vm1561 = vweird.f32 %v1544
    %vm1562 = vweird.f32 %v1555
    %vm1563 = vmor %vm1561, %vm1562
    %v1564 = vsel %vm1563, %v1555, %v1560
    %v1565 = vmul.f32 %v1531, %v1554
    %v1566 = vmul.f32 %v1532, %v1564
    %1567 = vrot.lane.b32.xlu0 %v699, 64
    %v1568 = vpop.permute.xlu0 %1567
    %v1570 = vmul.f32 %v1565, %v1568
    %v1571 = vmul.f32 %v1566, %v1568
    %1572 = vrot.lane.b32.xlu0 %v702, 64
    %v1573 = vpop.permute.xlu0 %1572
    %v1575 = vadd.f32 %v1570, %v1573
    %v1576 = vadd.f32 %v1571, %v1573
    %1577 = vst.msk [vmem:[#allocation2] sm:$0xff] %vm56, %v1575
    %1578 = vst.msk [vmem:[#allocation2 + $0x8] sm:$0xff] %vm56, %v1576
    // Predicated region
    $region30: #{decoder_block.1} parent=1 // pred_check
      _
    $region31: #{decoder_block.1} parent=1 // pred_check_branch
      %1580 = sbr.rel (0) target = $region33
    $region32: #{decoder_block.1} parent=1 // pred_region
      %1582 = vsyncadd [#allocation3], 0
      %s1583 = sshll.u32 [#allocation2], 4
      %s1584 = int_to_ptr.vmem [resolvable:$true] %s1583
      %s1585 = sshll.u32 %s7, 4
      %s1586 = int_to_ptr.hbm [resolvable:$true] %s1585
      %1591 = dma.vmem_to_hbm [thread:$0]  %s1584, 256, %s1586, [#allocation3], 128, 128, 8
    $region33: #{decoder_block.1} parent=1 // pred_fallthru
      _
    // Predicated region
    $region34: #{decoder_block.1} parent=1 // pred_check
      _
    $region35: #{decoder_block.1} parent=1 // pred_check_branch
      %1593 = sbr.rel (0) target = $region37
    $region36: #{decoder_block.1} parent=1 // pred_region
      %1595 = dma.done [#allocation3], 256
    $region37: #{decoder_block.1} parent=1 // pred_fallthru
      _
    %1596 = vsyncpa [#allocation3], 1

</llo_original>
